<compile_context>
chip_gen: v7x
topology: tpu7x:2x2x1
jax: 0.10.0
libtpu: 0.0.40
codegen_flags: <defaults>
</compile_context>

<pallas_src>
import functools

import jax
import jax.numpy as jnp
from jax.experimental import pallas as pl
from jax.experimental.pallas import tpu as pltpu


def _pb_controller_kernel(output_amplification, n_out,
                          inp_ref, last_out_ref, x_im_ref, x_ren_ref,
                          A_imT_ref, B_imT_ref,
                          C1T_ref, D12T_ref, lam_inv_ref, D11_sT_ref,
                          FT_ref, B1T_ref, B2T_ref, EinvT_ref,
                          C2T_ref, D21T_ref, D22T_ref,
                          out_ref):
    f32 = jnp.float32
    inp = inp_ref[...]            # (B, n_in)   measured plant state
    u_prev = last_out_ref[...]    # (1, n_out)  last controller output
    x_im = x_im_ref[...]          # (1, n_in)   internal-model state
    x = x_ren_ref[...]            # (1, d)      REN internal state

    # --- internal (noiseless) model, batch-invariant: computed once on (1, .) rows
    u_noiseless = (jnp.dot(x_im, A_imT_ref[...], preferred_element_type=f32)
                   + jnp.dot(u_prev, B_imT_ref[...], preferred_element_type=f32))
    w_in = inp - u_noiseless      # (B, n_in) via sublane broadcast

    # --- ContractiveREN: base of the nonlinear block, pre-scaled by Lambda^{-1}
    lam_inv = lam_inv_ref[...]    # (1, q)
    base_x = jnp.dot(x, C1T_ref[...], preferred_element_type=f32)        # (1, q) batch-invariant
    base_s = (base_x
              + jnp.dot(w_in, D12T_ref[...], preferred_element_type=f32)) * lam_inv  # (B, q)

    d11sT = D11_sT_ref[...]       # (q, q) == (Lambda^{-1} D11)^T  (strictly upper-tri)
    B1T = B1T_ref[...]            # (q, d)
    D21T = D21T_ref[...]          # (q, n_out)
    bsz, q = base_s.shape
    d = B1T.shape[1]

    # Hoisted, loop-invariant row/column slices (the Python loop is fully unrolled).
    base_cols = [base_s[:, i:i + 1] for i in range(q)]     # (B, 1) each
    d11_rows = [d11sT[i:i + 1, :] for i in range(q)]       # (1, q) each
    b1_rows = [B1T[i:i + 1, :] for i in range(q)]          # (1, d) each
    d21_rows = [D21T[i:i + 1, :] for i in range(q)]        # (1, n_out) each

    # Sequential acyclic nonlinearity.  The loop-carried dependency (contrib -> t)
    # runs entirely on VPU/EUP; the wB1 / wD21 rank-1 accumulations are off the
    # serial chain and replace the post-loop w@B1^T / w@D21^T matmuls.
    contrib = jnp.zeros((bsz, q), f32)
    wB1 = jnp.zeros((bsz, d), f32)
    wD21 = jnp.zeros((bsz, n_out), f32)
    for i in range(q):
        t_i = jnp.tanh(base_cols[i] + contrib[:, i:i + 1])   # (B, 1)
        contrib = contrib + t_i * d11_rows[i]                # rank-1 VPU update
        wB1 = wB1 + t_i * b1_rows[i]
        wD21 = wD21 + t_i * d21_rows[i]

    # next REN state:  x+ = E^{-1} (F x + B1 w + B2 u)
    x_state = jnp.dot(x, FT_ref[...], preferred_element_type=f32)        # (1, d) batch-invariant
    x_pre = (x_state + wB1
             + jnp.dot(w_in, B2T_ref[...], preferred_element_type=f32))  # (B, d)
    x_next = jnp.dot(x_pre, EinvT_ref[...], preferred_element_type=f32)

    # output:  y = C2 x+ + D21 w + D22 u
    y = (jnp.dot(x_next, C2T_ref[...], preferred_element_type=f32)
         + wD21
         + jnp.dot(w_in, D22T_ref[...], preferred_element_type=f32))

    out_ref[:, 0:n_out] = (y * output_amplification).astype(out_ref.dtype)
    out_ref[:, n_out:n_out + d] = x_next.astype(out_ref.dtype)


def pb_controller_forward(input_t, state, params, output_amplification=20.0):
    """input_t: (B, 1, input_dim) -> (y_out (B, 1, output_dim), x_ren_next (B, d))."""
    f32 = jnp.float32
    B = input_t.shape[0]
    n_in = input_t.shape[-1]
    n_out = params["C2"].shape[0]
    d = params["F"].shape[0]
    q = params["D11"].shape[0]

    inp2d = input_t.reshape(B, n_in).astype(f32)
    # state passed as single rows; the kernel broadcasts batch-invariant terms.
    last_out = state["last_output"].reshape(1, n_out).astype(f32)
    x_im = state["x_im"].reshape(1, n_in).astype(f32)
    x_ren = state["x_ren"].reshape(1, d).astype(f32)

    lam_inv = params["lam_inv"].reshape(1, q).astype(f32)
    # Pre-transposed weights (kernel never computes `.T`); D11 pre-scaled by Lambda^{-1}:
    #   D11_sT[j, i] = lam_inv[i] * D11[i, j]
    D11_sT = (params["D11"].T * lam_inv).astype(f32)

    args = (inp2d, last_out, x_im, x_ren,
            params["A_im"].T, params["B_im"].T,
            params["C1"].T, params["D12"].T, lam_inv, D11_sT,
            params["F"].T, params["B1"].T, params["B2"].T, params["E_inv"].T,
            params["C2"].T, params["D21"].T, params["D22"].T)
    args = tuple(jnp.asarray(a, f32) for a in args)

    def full_spec(a):
        nd = a.ndim
        return pl.BlockSpec(a.shape, lambda i, _nd=nd: (0,) * _nd)

    flops = 2 * (n_in * n_in + n_in * n_out            # internal model (single row)
                 + d * q + d * d                       # batch-invariant REN state terms
                 + B * (n_in * q + q * q + q * d + n_in * d + d * d
                        + d * n_out + q * n_out + n_in * n_out))
    bytes_accessed = sum(int(a.size) * a.dtype.itemsize for a in args) \
        + B * (n_out + d) * 4
    cost = pl.CostEstimate(flops=int(flops), transcendentals=int(B * q),
                           bytes_accessed=int(bytes_accessed))

    kernel = functools.partial(_pb_controller_kernel,
                               float(output_amplification), int(n_out))
    out = pl.pallas_call(
        kernel,
        grid=(1,),
        in_specs=[full_spec(a) for a in args],
        out_specs=pl.BlockSpec((B, n_out + d), lambda i: (0, 0)),
        out_shape=jax.ShapeDtypeStruct((B, n_out + d), f32),
        compiler_params=pltpu.CompilerParams(dimension_semantics=("arbitrary",)),
        cost_estimate=cost,
    )(*args)

    y2d = out[:, :n_out]
    x_next = out[:, n_out:]
    return y2d.reshape(B, 1, n_out), x_next


def init_params(key, input_dim, output_dim, dim_internal, dim_nl,
                init_std=0.5, eps=1e-3, contraction_rate_lb=1.0):
    """Deterministic synthetic parameters; mirrors ContractiveREN._update_model_param."""
    ks = jax.random.split(key, 9)
    d, q = dim_internal, dim_nl
    f32 = jnp.float32
    X = init_std * jax.random.normal(ks[0], (2 * d + q, 2 * d + q), f32)
    Y = init_std * jax.random.normal(ks[1], (d, d), f32)
    B2 = init_std * jax.random.normal(ks[2], (d, input_dim), f32)
    C2 = init_std * jax.random.normal(ks[3], (output_dim, d), f32)
    D21 = init_std * jax.random.normal(ks[4], (output_dim, q), f32)
    D22 = init_std * jax.random.normal(ks[5], (output_dim, input_dim), f32)
    D12 = init_std * jax.random.normal(ks[6], (q, input_dim), f32)

    H = X.T @ X + eps * jnp.eye(2 * d + q, dtype=f32)
    H11 = H[:d, :d]
    H21 = H[d:d + q, :d]
    H22 = H[d:d + q, d:d + q]
    H31 = H[d + q:, :d]
    H32 = H[d + q:, d:d + q]
    P = H33 = H[d + q:, d + q:]
    F = H31
    B1 = H32
    E = 0.5 * (H11 + contraction_rate_lb * P + Y - Y.T)
    Lambda = 0.5 * jnp.diag(H22)
    D11 = -jnp.tril(H22, k=-1)
    C1 = -H21
    E_inv = jnp.linalg.inv(E)          # parameter-dependent only -> glue, not kernel

    # simple stable linear internal (noiseless plant) model
    A_im = 0.5 * jnp.eye(input_dim, dtype=f32) \
        + 0.05 * jax.random.normal(ks[7], (input_dim, input_dim), f32)
    B_im = 0.1 * jax.random.normal(ks[8], (input_dim, output_dim), f32)

    params = dict(A_im=A_im, B_im=B_im,
                  C1=C1, D11=D11, D12=D12,
                  lam_inv=(1.0 / Lambda).reshape(1, q),
                  F=F, B1=B1, B2=B2, E_inv=E_inv,
                  C2=C2, D21=D21, D22=D22)
    return {k: v.astype(f32) for k, v in params.items()}


def reference_forward(input_t, state, params, amp=20.0):
    """Pure-JAX reference mirroring the PyTorch forward pass (for validation)."""
    B, _, n_in = input_t.shape
    inp = input_t.reshape(B, n_in)
    u_prev = jnp.broadcast_to(state["last_output"], (B, state["last_output"].shape[-1]))
    x_im = jnp.broadcast_to(state["x_im"], (B, n_in))
    x = jnp.broadcast_to(state["x_ren"], (B, state["x_ren"].shape[-1]))
    u_noiseless = x_im @ params["A_im"].T + u_prev @ params["B_im"].T
    w_in = inp - u_noiseless
    q = params["D11"].shape[0]
    base = x @ params["C1"].T + w_in @ params["D12"].T
    w = jnp.zeros((B, q), jnp.float32)
    for i in range(q):
        v_i = base[:, i] + w @ params["D11"][i]
        w = w.at[:, i].set(jnp.tanh(v_i * params["lam_inv"][0, i]))
    x_next = (x @ params["F"].T + w @ params["B1"].T + w_in @ params["B2"].T) @ params["E_inv"].T
    y = x_next @ params["C2"].T + w @ params["D21"].T + w_in @ params["D22"].T
    return (amp * y).reshape(B, 1, -1), x_next


if __name__ == "__main__":
    B, input_dim, output_dim, dim_internal, dim_nl = 2, 4, 2, 8, 8

    key = jax.random.PRNGKey(0)
    k_params, k_out_init, k_in_init, k_input = jax.random.split(key, 4)

    params = init_params(k_params, input_dim, output_dim, dim_internal, dim_nl)

    # controller memory (reset() state): last_output = output_init, REN state = 0,
    # internal-model state starts at its init (zero here)
    output_init = 0.1 * jax.random.normal(k_out_init, (1, output_dim), jnp.float32)
    _input_init = jax.random.normal(k_in_init, (1, input_dim), jnp.float32)  # unused in 1 step
    state = dict(last_output=output_init,
                 x_im=jnp.zeros((1, input_dim), jnp.float32),
                 x_ren=jnp.zeros((1, dim_internal), jnp.float32))

    input_t = jax.random.normal(k_input, (B, 1, input_dim), jnp.float32)

    y_out, x_ren_next = pb_controller_forward(input_t, state, params,
                                              output_amplification=20.0)
    jax.block_until_ready(y_out)

    y_ref, x_ref = reference_forward(input_t, state, params, amp=20.0)
    assert y_out.shape == (B, 1, output_dim)
    assert x_ren_next.shape == (B, dim_internal)
    assert jnp.allclose(y_out, y_ref, rtol=1e-4, atol=1e-4), "kernel mismatch vs reference"
    assert jnp.allclose(x_ren_next, x_ref, rtol=1e-4, atol=1e-4), "state mismatch vs reference"

    print("KERNEL_OK")
</pallas_src>

<mosaic_0001>
module attributes {stable_mosaic.version = 11 : i64} {
  func.func @_pb_controller_kernel(%arg0: i32, %arg1: memref<2x4xf32, #tpu.memory_space<vmem>>, %arg2: memref<1x2xf32, #tpu.memory_space<vmem>>, %arg3: memref<1x4xf32, #tpu.memory_space<vmem>>, %arg4: memref<1x8xf32, #tpu.memory_space<vmem>>, %arg5: memref<4x4xf32, #tpu.memory_space<vmem>>, %arg6: memref<2x4xf32, #tpu.memory_space<vmem>>, %arg7: memref<8x8xf32, #tpu.memory_space<vmem>>, %arg8: memref<4x8xf32, #tpu.memory_space<vmem>>, %arg9: memref<1x8xf32, #tpu.memory_space<vmem>>, %arg10: memref<8x8xf32, #tpu.memory_space<vmem>>, %arg11: memref<8x8xf32, #tpu.memory_space<vmem>>, %arg12: memref<8x8xf32, #tpu.memory_space<vmem>>, %arg13: memref<4x8xf32, #tpu.memory_space<vmem>>, %arg14: memref<8x8xf32, #tpu.memory_space<vmem>>, %arg15: memref<8x2xf32, #tpu.memory_space<vmem>>, %arg16: memref<8x2xf32, #tpu.memory_space<vmem>>, %arg17: memref<4x2xf32, #tpu.memory_space<vmem>>, %arg18: memref<2x10xf32, #tpu.memory_space<vmem>>) attributes {dimension_semantics = [#tpu.dimension_semantics<arbitrary>], iteration_bounds = array<i64: 1>, scalar_prefetch = 0 : i64, scratch_operands = 0 : i64, tpu.core_type = #tpu.core_type<tc>, window_params = [{pipeline_mode = #tpu.pipeline_mode<synchronous>, transform_indices = @transform_0, window_bounds = array<i64: 2, 4>}, {pipeline_mode = #tpu.pipeline_mode<synchronous>, transform_indices = @transform_1, window_bounds = array<i64: 1, 2>}, {pipeline_mode = #tpu.pipeline_mode<synchronous>, transform_indices = @transform_2, window_bounds = array<i64: 1, 4>}, {pipeline_mode = #tpu.pipeline_mode<synchronous>, transform_indices = @transform_3, window_bounds = array<i64: 1, 8>}, {pipeline_mode = #tpu.pipeline_mode<synchronous>, transform_indices = @transform_4, window_bounds = array<i64: 4, 4>}, {pipeline_mode = #tpu.pipeline_mode<synchronous>, transform_indices = @transform_5, window_bounds = array<i64: 2, 4>}, {pipeline_mode = #tpu.pipeline_mode<synchronous>, transform_indices = @transform_6, window_bounds = array<i64: 8, 8>}, {pipeline_mode = #tpu.pipeline_mode<synchronous>, transform_indices = @transform_7, window_bounds = array<i64: 4, 8>}, {pipeline_mode = #tpu.pipeline_mode<synchronous>, transform_indices = @transform_8, window_bounds = array<i64: 1, 8>}, {pipeline_mode = #tpu.pipeline_mode<synchronous>, transform_indices = @transform_9, window_bounds = array<i64: 8, 8>}, {pipeline_mode = #tpu.pipeline_mode<synchronous>, transform_indices = @transform_10, window_bounds = array<i64: 8, 8>}, {pipeline_mode = #tpu.pipeline_mode<synchronous>, transform_indices = @transform_11, window_bounds = array<i64: 8, 8>}, {pipeline_mode = #tpu.pipeline_mode<synchronous>, transform_indices = @transform_12, window_bounds = array<i64: 4, 8>}, {pipeline_mode = #tpu.pipeline_mode<synchronous>, transform_indices = @transform_13, window_bounds = array<i64: 8, 8>}, {pipeline_mode = #tpu.pipeline_mode<synchronous>, transform_indices = @transform_14, window_bounds = array<i64: 8, 2>}, {pipeline_mode = #tpu.pipeline_mode<synchronous>, transform_indices = @transform_15, window_bounds = array<i64: 8, 2>}, {pipeline_mode = #tpu.pipeline_mode<synchronous>, transform_indices = @transform_16, window_bounds = array<i64: 4, 2>}, {pipeline_mode = #tpu.pipeline_mode<synchronous>, transform_indices = @transform_17, window_bounds = array<i64: 2, 10>}]} {
    %c0 = arith.constant 0 : index
    %c0_0 = arith.constant 0 : index
    %0 = vector.load %arg1[%c0, %c0_0] : memref<2x4xf32, #tpu.memory_space<vmem>>, vector<2x4xf32>
    %c0_1 = arith.constant 0 : index
    %c0_2 = arith.constant 0 : index
    %1 = vector.load %arg2[%c0_1, %c0_2] : memref<1x2xf32, #tpu.memory_space<vmem>>, vector<1x2xf32>
    %c0_3 = arith.constant 0 : index
    %c0_4 = arith.constant 0 : index
    %2 = vector.load %arg3[%c0_3, %c0_4] : memref<1x4xf32, #tpu.memory_space<vmem>>, vector<1x4xf32>
    %c0_5 = arith.constant 0 : index
    %c0_6 = arith.constant 0 : index
    %3 = vector.load %arg4[%c0_5, %c0_6] : memref<1x8xf32, #tpu.memory_space<vmem>>, vector<1x8xf32>
    %c0_7 = arith.constant 0 : index
    %c0_8 = arith.constant 0 : index
    %4 = vector.load %arg5[%c0_7, %c0_8] : memref<4x4xf32, #tpu.memory_space<vmem>>, vector<4x4xf32>
    %cst = arith.constant dense<0.000000e+00> : vector<1x4xf32>
    %5 = tpu.matmul %2, %4, %cst {dimension_numbers = #tpu.dot_dimension_numbers<[1], [0], [0], [1], [0, 0, 1, 1], [], []>} : vector<1x4xf32>, vector<4x4xf32>, vector<1x4xf32> -> vector<1x4xf32>
    %c0_9 = arith.constant 0 : index
    %c0_10 = arith.constant 0 : index
    %6 = vector.load %arg6[%c0_9, %c0_10] : memref<2x4xf32, #tpu.memory_space<vmem>>, vector<2x4xf32>
    %cst_11 = arith.constant dense<0.000000e+00> : vector<1x4xf32>
    %7 = tpu.matmul %1, %6, %cst_11 {dimension_numbers = #tpu.dot_dimension_numbers<[1], [0], [0], [1], [0, 0, 1, 1], [], []>} : vector<1x2xf32>, vector<2x4xf32>, vector<1x4xf32> -> vector<1x4xf32>
    %8 = arith.addf %5, %7 : vector<1x4xf32>
    %9 = vector.broadcast %8 : vector<1x4xf32> to vector<2x4xf32>
    %10 = arith.subf %0, %9 : vector<2x4xf32>
    %c0_12 = arith.constant 0 : index
    %c0_13 = arith.constant 0 : index
    %11 = vector.load %arg9[%c0_12, %c0_13] : memref<1x8xf32, #tpu.memory_space<vmem>>, vector<1x8xf32>
    %c0_14 = arith.constant 0 : index
    %c0_15 = arith.constant 0 : index
    %12 = vector.load %arg7[%c0_14, %c0_15] : memref<8x8xf32, #tpu.memory_space<vmem>>, vector<8x8xf32>
    %cst_16 = arith.constant dense<0.000000e+00> : vector<1x8xf32>
    %13 = tpu.matmul %3, %12, %cst_16 {dimension_numbers = #tpu.dot_dimension_numbers<[1], [0], [0], [1], [0, 0, 1, 1], [], []>} : vector<1x8xf32>, vector<8x8xf32>, vector<1x8xf32> -> vector<1x8xf32>
    %c0_17 = arith.constant 0 : index
    %c0_18 = arith.constant 0 : index
    %14 = vector.load %arg8[%c0_17, %c0_18] : memref<4x8xf32, #tpu.memory_space<vmem>>, vector<4x8xf32>
    %cst_19 = arith.constant dense<0.000000e+00> : vector<2x8xf32>
    %15 = tpu.matmul %10, %14, %cst_19 {dimension_numbers = #tpu.dot_dimension_numbers<[1], [0], [0], [1], [0, 0, 1, 1], [], []>} : vector<2x4xf32>, vector<4x8xf32>, vector<2x8xf32> -> vector<2x8xf32>
    %16 = vector.broadcast %13 : vector<1x8xf32> to vector<2x8xf32>
    %17 = arith.addf %16, %15 : vector<2x8xf32>
    %18 = vector.broadcast %11 : vector<1x8xf32> to vector<2x8xf32>
    %19 = arith.mulf %17, %18 : vector<2x8xf32>
    %c0_20 = arith.constant 0 : index
    %c0_21 = arith.constant 0 : index
    %20 = vector.load %arg10[%c0_20, %c0_21] : memref<8x8xf32, #tpu.memory_space<vmem>>, vector<8x8xf32>
    %c0_22 = arith.constant 0 : index
    %c0_23 = arith.constant 0 : index
    %21 = vector.load %arg12[%c0_22, %c0_23] : memref<8x8xf32, #tpu.memory_space<vmem>>, vector<8x8xf32>
    %c0_24 = arith.constant 0 : index
    %c0_25 = arith.constant 0 : index
    %22 = vector.load %arg16[%c0_24, %c0_25] : memref<8x2xf32, #tpu.memory_space<vmem>>, vector<8x2xf32>
    %23 = vector.extract_strided_slice %19 {offsets = [0, 0], sizes = [2, 1], strides = [1, 1]} : vector<2x8xf32> to vector<2x1xf32>
    %24 = vector.extract_strided_slice %19 {offsets = [0, 1], sizes = [2, 1], strides = [1, 1]} : vector<2x8xf32> to vector<2x1xf32>
    %25 = vector.extract_strided_slice %19 {offsets = [0, 2], sizes = [2, 1], strides = [1, 1]} : vector<2x8xf32> to vector<2x1xf32>
    %26 = vector.extract_strided_slice %19 {offsets = [0, 3], sizes = [2, 1], strides = [1, 1]} : vector<2x8xf32> to vector<2x1xf32>
    %27 = vector.extract_strided_slice %19 {offsets = [0, 4], sizes = [2, 1], strides = [1, 1]} : vector<2x8xf32> to vector<2x1xf32>
    %28 = vector.extract_strided_slice %19 {offsets = [0, 5], sizes = [2, 1], strides = [1, 1]} : vector<2x8xf32> to vector<2x1xf32>
    %29 = vector.extract_strided_slice %19 {offsets = [0, 6], sizes = [2, 1], strides = [1, 1]} : vector<2x8xf32> to vector<2x1xf32>
    %30 = vector.extract_strided_slice %19 {offsets = [0, 7], sizes = [2, 1], strides = [1, 1]} : vector<2x8xf32> to vector<2x1xf32>
    %31 = vector.extract_strided_slice %20 {offsets = [0, 0], sizes = [1, 8], strides = [1, 1]} : vector<8x8xf32> to vector<1x8xf32>
    %32 = vector.extract_strided_slice %20 {offsets = [1, 0], sizes = [1, 8], strides = [1, 1]} : vector<8x8xf32> to vector<1x8xf32>
    %33 = vector.extract_strided_slice %20 {offsets = [2, 0], sizes = [1, 8], strides = [1, 1]} : vector<8x8xf32> to vector<1x8xf32>
    %34 = vector.extract_strided_slice %20 {offsets = [3, 0], sizes = [1, 8], strides = [1, 1]} : vector<8x8xf32> to vector<1x8xf32>
    %35 = vector.extract_strided_slice %20 {offsets = [4, 0], sizes = [1, 8], strides = [1, 1]} : vector<8x8xf32> to vector<1x8xf32>
    %36 = vector.extract_strided_slice %20 {offsets = [5, 0], sizes = [1, 8], strides = [1, 1]} : vector<8x8xf32> to vector<1x8xf32>
    %37 = vector.extract_strided_slice %20 {offsets = [6, 0], sizes = [1, 8], strides = [1, 1]} : vector<8x8xf32> to vector<1x8xf32>
    %38 = vector.extract_strided_slice %21 {offsets = [0, 0], sizes = [1, 8], strides = [1, 1]} : vector<8x8xf32> to vector<1x8xf32>
    %39 = vector.extract_strided_slice %21 {offsets = [1, 0], sizes = [1, 8], strides = [1, 1]} : vector<8x8xf32> to vector<1x8xf32>
    %40 = vector.extract_strided_slice %21 {offsets = [2, 0], sizes = [1, 8], strides = [1, 1]} : vector<8x8xf32> to vector<1x8xf32>
    %41 = vector.extract_strided_slice %21 {offsets = [3, 0], sizes = [1, 8], strides = [1, 1]} : vector<8x8xf32> to vector<1x8xf32>
    %42 = vector.extract_strided_slice %21 {offsets = [4, 0], sizes = [1, 8], strides = [1, 1]} : vector<8x8xf32> to vector<1x8xf32>
    %43 = vector.extract_strided_slice %21 {offsets = [5, 0], sizes = [1, 8], strides = [1, 1]} : vector<8x8xf32> to vector<1x8xf32>
    %44 = vector.extract_strided_slice %21 {offsets = [6, 0], sizes = [1, 8], strides = [1, 1]} : vector<8x8xf32> to vector<1x8xf32>
    %45 = vector.extract_strided_slice %21 {offsets = [7, 0], sizes = [1, 8], strides = [1, 1]} : vector<8x8xf32> to vector<1x8xf32>
    %46 = vector.extract_strided_slice %22 {offsets = [0, 0], sizes = [1, 2], strides = [1, 1]} : vector<8x2xf32> to vector<1x2xf32>
    %47 = vector.extract_strided_slice %22 {offsets = [1, 0], sizes = [1, 2], strides = [1, 1]} : vector<8x2xf32> to vector<1x2xf32>
    %48 = vector.extract_strided_slice %22 {offsets = [2, 0], sizes = [1, 2], strides = [1, 1]} : vector<8x2xf32> to vector<1x2xf32>
    %49 = vector.extract_strided_slice %22 {offsets = [3, 0], sizes = [1, 2], strides = [1, 1]} : vector<8x2xf32> to vector<1x2xf32>
    %50 = vector.extract_strided_slice %22 {offsets = [4, 0], sizes = [1, 2], strides = [1, 1]} : vector<8x2xf32> to vector<1x2xf32>
    %51 = vector.extract_strided_slice %22 {offsets = [5, 0], sizes = [1, 2], strides = [1, 1]} : vector<8x2xf32> to vector<1x2xf32>
    %52 = vector.extract_strided_slice %22 {offsets = [6, 0], sizes = [1, 2], strides = [1, 1]} : vector<8x2xf32> to vector<1x2xf32>
    %53 = vector.extract_strided_slice %22 {offsets = [7, 0], sizes = [1, 2], strides = [1, 1]} : vector<8x2xf32> to vector<1x2xf32>
    %cst_26 = arith.constant 0.000000e+00 : f32
    %54 = vector.broadcast %cst_26 : f32 to vector<2x8xf32>
    %cst_27 = arith.constant 0.000000e+00 : f32
    %55 = vector.broadcast %cst_27 : f32 to vector<2x8xf32>
    %cst_28 = arith.constant 0.000000e+00 : f32
    %56 = vector.broadcast %cst_28 : f32 to vector<2x2xf32>
    %57 = vector.extract_strided_slice %54 {offsets = [0, 0], sizes = [2, 1], strides = [1, 1]} : vector<2x8xf32> to vector<2x1xf32>
    %58 = arith.addf %23, %57 : vector<2x1xf32>
    %59 = math.tanh %58 : vector<2x1xf32>
    %60 = vector.broadcast %59 : vector<2x1xf32> to vector<2x8xf32>
    %61 = vector.broadcast %31 : vector<1x8xf32> to vector<2x8xf32>
    %62 = arith.mulf %60, %61 : vector<2x8xf32>
    %63 = arith.addf %54, %62 : vector<2x8xf32>
    %64 = vector.broadcast %59 : vector<2x1xf32> to vector<2x8xf32>
    %65 = vector.broadcast %38 : vector<1x8xf32> to vector<2x8xf32>
    %66 = arith.mulf %64, %65 : vector<2x8xf32>
    %67 = arith.addf %55, %66 : vector<2x8xf32>
    %68 = vector.broadcast %59 : vector<2x1xf32> to vector<2x2xf32>
    %69 = vector.broadcast %46 : vector<1x2xf32> to vector<2x2xf32>
    %70 = arith.mulf %68, %69 : vector<2x2xf32>
    %71 = arith.addf %56, %70 : vector<2x2xf32>
    %72 = vector.extract_strided_slice %63 {offsets = [0, 1], sizes = [2, 1], strides = [1, 1]} : vector<2x8xf32> to vector<2x1xf32>
    %73 = arith.addf %24, %72 : vector<2x1xf32>
    %74 = math.tanh %73 : vector<2x1xf32>
    %75 = vector.broadcast %74 : vector<2x1xf32> to vector<2x8xf32>
    %76 = vector.broadcast %32 : vector<1x8xf32> to vector<2x8xf32>
    %77 = arith.mulf %75, %76 : vector<2x8xf32>
    %78 = arith.addf %63, %77 : vector<2x8xf32>
    %79 = vector.broadcast %74 : vector<2x1xf32> to vector<2x8xf32>
    %80 = vector.broadcast %39 : vector<1x8xf32> to vector<2x8xf32>
    %81 = arith.mulf %79, %80 : vector<2x8xf32>
    %82 = arith.addf %67, %81 : vector<2x8xf32>
    %83 = vector.broadcast %74 : vector<2x1xf32> to vector<2x2xf32>
    %84 = vector.broadcast %47 : vector<1x2xf32> to vector<2x2xf32>
    %85 = arith.mulf %83, %84 : vector<2x2xf32>
    %86 = arith.addf %71, %85 : vector<2x2xf32>
    %87 = vector.extract_strided_slice %78 {offsets = [0, 2], sizes = [2, 1], strides = [1, 1]} : vector<2x8xf32> to vector<2x1xf32>
    %88 = arith.addf %25, %87 : vector<2x1xf32>
    %89 = math.tanh %88 : vector<2x1xf32>
    %90 = vector.broadcast %89 : vector<2x1xf32> to vector<2x8xf32>
    %91 = vector.broadcast %33 : vector<1x8xf32> to vector<2x8xf32>
    %92 = arith.mulf %90, %91 : vector<2x8xf32>
    %93 = arith.addf %78, %92 : vector<2x8xf32>
    %94 = vector.broadcast %89 : vector<2x1xf32> to vector<2x8xf32>
    %95 = vector.broadcast %40 : vector<1x8xf32> to vector<2x8xf32>
    %96 = arith.mulf %94, %95 : vector<2x8xf32>
    %97 = arith.addf %82, %96 : vector<2x8xf32>
    %98 = vector.broadcast %89 : vector<2x1xf32> to vector<2x2xf32>
    %99 = vector.broadcast %48 : vector<1x2xf32> to vector<2x2xf32>
    %100 = arith.mulf %98, %99 : vector<2x2xf32>
    %101 = arith.addf %86, %100 : vector<2x2xf32>
    %102 = vector.extract_strided_slice %93 {offsets = [0, 3], sizes = [2, 1], strides = [1, 1]} : vector<2x8xf32> to vector<2x1xf32>
    %103 = arith.addf %26, %102 : vector<2x1xf32>
    %104 = math.tanh %103 : vector<2x1xf32>
    %105 = vector.broadcast %104 : vector<2x1xf32> to vector<2x8xf32>
    %106 = vector.broadcast %34 : vector<1x8xf32> to vector<2x8xf32>
    %107 = arith.mulf %105, %106 : vector<2x8xf32>
    %108 = arith.addf %93, %107 : vector<2x8xf32>
    %109 = vector.broadcast %104 : vector<2x1xf32> to vector<2x8xf32>
    %110 = vector.broadcast %41 : vector<1x8xf32> to vector<2x8xf32>
    %111 = arith.mulf %109, %110 : vector<2x8xf32>
    %112 = arith.addf %97, %111 : vector<2x8xf32>
    %113 = vector.broadcast %104 : vector<2x1xf32> to vector<2x2xf32>
    %114 = vector.broadcast %49 : vector<1x2xf32> to vector<2x2xf32>
    %115 = arith.mulf %113, %114 : vector<2x2xf32>
    %116 = arith.addf %101, %115 : vector<2x2xf32>
    %117 = vector.extract_strided_slice %108 {offsets = [0, 4], sizes = [2, 1], strides = [1, 1]} : vector<2x8xf32> to vector<2x1xf32>
    %118 = arith.addf %27, %117 : vector<2x1xf32>
    %119 = math.tanh %118 : vector<2x1xf32>
    %120 = vector.broadcast %119 : vector<2x1xf32> to vector<2x8xf32>
    %121 = vector.broadcast %35 : vector<1x8xf32> to vector<2x8xf32>
    %122 = arith.mulf %120, %121 : vector<2x8xf32>
    %123 = arith.addf %108, %122 : vector<2x8xf32>
    %124 = vector.broadcast %119 : vector<2x1xf32> to vector<2x8xf32>
    %125 = vector.broadcast %42 : vector<1x8xf32> to vector<2x8xf32>
    %126 = arith.mulf %124, %125 : vector<2x8xf32>
    %127 = arith.addf %112, %126 : vector<2x8xf32>
    %128 = vector.broadcast %119 : vector<2x1xf32> to vector<2x2xf32>
    %129 = vector.broadcast %50 : vector<1x2xf32> to vector<2x2xf32>
    %130 = arith.mulf %128, %129 : vector<2x2xf32>
    %131 = arith.addf %116, %130 : vector<2x2xf32>
    %132 = vector.extract_strided_slice %123 {offsets = [0, 5], sizes = [2, 1], strides = [1, 1]} : vector<2x8xf32> to vector<2x1xf32>
    %133 = arith.addf %28, %132 : vector<2x1xf32>
    %134 = math.tanh %133 : vector<2x1xf32>
    %135 = vector.broadcast %134 : vector<2x1xf32> to vector<2x8xf32>
    %136 = vector.broadcast %36 : vector<1x8xf32> to vector<2x8xf32>
    %137 = arith.mulf %135, %136 : vector<2x8xf32>
    %138 = arith.addf %123, %137 : vector<2x8xf32>
    %139 = vector.broadcast %134 : vector<2x1xf32> to vector<2x8xf32>
    %140 = vector.broadcast %43 : vector<1x8xf32> to vector<2x8xf32>
    %141 = arith.mulf %139, %140 : vector<2x8xf32>
    %142 = arith.addf %127, %141 : vector<2x8xf32>
    %143 = vector.broadcast %134 : vector<2x1xf32> to vector<2x2xf32>
    %144 = vector.broadcast %51 : vector<1x2xf32> to vector<2x2xf32>
    %145 = arith.mulf %143, %144 : vector<2x2xf32>
    %146 = arith.addf %131, %145 : vector<2x2xf32>
    %147 = vector.extract_strided_slice %138 {offsets = [0, 6], sizes = [2, 1], strides = [1, 1]} : vector<2x8xf32> to vector<2x1xf32>
    %148 = arith.addf %29, %147 : vector<2x1xf32>
    %149 = math.tanh %148 : vector<2x1xf32>
    %150 = vector.broadcast %149 : vector<2x1xf32> to vector<2x8xf32>
    %151 = vector.broadcast %37 : vector<1x8xf32> to vector<2x8xf32>
    %152 = arith.mulf %150, %151 : vector<2x8xf32>
    %153 = arith.addf %138, %152 : vector<2x8xf32>
    %154 = vector.broadcast %149 : vector<2x1xf32> to vector<2x8xf32>
    %155 = vector.broadcast %44 : vector<1x8xf32> to vector<2x8xf32>
    %156 = arith.mulf %154, %155 : vector<2x8xf32>
    %157 = arith.addf %142, %156 : vector<2x8xf32>
    %158 = vector.broadcast %149 : vector<2x1xf32> to vector<2x2xf32>
    %159 = vector.broadcast %52 : vector<1x2xf32> to vector<2x2xf32>
    %160 = arith.mulf %158, %159 : vector<2x2xf32>
    %161 = arith.addf %146, %160 : vector<2x2xf32>
    %162 = vector.extract_strided_slice %153 {offsets = [0, 7], sizes = [2, 1], strides = [1, 1]} : vector<2x8xf32> to vector<2x1xf32>
    %163 = arith.addf %30, %162 : vector<2x1xf32>
    %164 = math.tanh %163 : vector<2x1xf32>
    %165 = vector.broadcast %164 : vector<2x1xf32> to vector<2x8xf32>
    %166 = vector.broadcast %45 : vector<1x8xf32> to vector<2x8xf32>
    %167 = arith.mulf %165, %166 : vector<2x8xf32>
    %168 = arith.addf %157, %167 : vector<2x8xf32>
    %169 = vector.broadcast %164 : vector<2x1xf32> to vector<2x2xf32>
    %170 = vector.broadcast %53 : vector<1x2xf32> to vector<2x2xf32>
    %171 = arith.mulf %169, %170 : vector<2x2xf32>
    %172 = arith.addf %161, %171 : vector<2x2xf32>
    %c0_29 = arith.constant 0 : index
    %c0_30 = arith.constant 0 : index
    %173 = vector.load %arg11[%c0_29, %c0_30] : memref<8x8xf32, #tpu.memory_space<vmem>>, vector<8x8xf32>
    %cst_31 = arith.constant dense<0.000000e+00> : vector<1x8xf32>
    %174 = tpu.matmul %3, %173, %cst_31 {dimension_numbers = #tpu.dot_dimension_numbers<[1], [0], [0], [1], [0, 0, 1, 1], [], []>} : vector<1x8xf32>, vector<8x8xf32>, vector<1x8xf32> -> vector<1x8xf32>
    %175 = vector.broadcast %174 : vector<1x8xf32> to vector<2x8xf32>
    %176 = arith.addf %175, %168 : vector<2x8xf32>
    %c0_32 = arith.constant 0 : index
    %c0_33 = arith.constant 0 : index
    %177 = vector.load %arg13[%c0_32, %c0_33] : memref<4x8xf32, #tpu.memory_space<vmem>>, vector<4x8xf32>
    %cst_34 = arith.constant dense<0.000000e+00> : vector<2x8xf32>
    %178 = tpu.matmul %10, %177, %cst_34 {dimension_numbers = #tpu.dot_dimension_numbers<[1], [0], [0], [1], [0, 0, 1, 1], [], []>} : vector<2x4xf32>, vector<4x8xf32>, vector<2x8xf32> -> vector<2x8xf32>
    %179 = arith.addf %176, %178 : vector<2x8xf32>
    %c0_35 = arith.constant 0 : index
    %c0_36 = arith.constant 0 : index
    %180 = vector.load %arg14[%c0_35, %c0_36] : memref<8x8xf32, #tpu.memory_space<vmem>>, vector<8x8xf32>
    %cst_37 = arith.constant dense<0.000000e+00> : vector<2x8xf32>
    %181 = tpu.matmul %179, %180, %cst_37 {dimension_numbers = #tpu.dot_dimension_numbers<[1], [0], [0], [1], [0, 0, 1, 1], [], []>} : vector<2x8xf32>, vector<8x8xf32>, vector<2x8xf32> -> vector<2x8xf32>
    %c0_38 = arith.constant 0 : index
    %c0_39 = arith.constant 0 : index
    %182 = vector.load %arg15[%c0_38, %c0_39] : memref<8x2xf32, #tpu.memory_space<vmem>>, vector<8x2xf32>
    %cst_40 = arith.constant dense<0.000000e+00> : vector<2x2xf32>
    %183 = tpu.matmul %181, %182, %cst_40 {dimension_numbers = #tpu.dot_dimension_numbers<[1], [0], [0], [1], [0, 0, 1, 1], [], []>} : vector<2x8xf32>, vector<8x2xf32>, vector<2x2xf32> -> vector<2x2xf32>
    %184 = arith.addf %183, %172 : vector<2x2xf32>
    %c0_41 = arith.constant 0 : index
    %c0_42 = arith.constant 0 : index
    %185 = vector.load %arg17[%c0_41, %c0_42] : memref<4x2xf32, #tpu.memory_space<vmem>>, vector<4x2xf32>
    %cst_43 = arith.constant dense<0.000000e+00> : vector<2x2xf32>
    %186 = tpu.matmul %10, %185, %cst_43 {dimension_numbers = #tpu.dot_dimension_numbers<[1], [0], [0], [1], [0, 0, 1, 1], [], []>} : vector<2x4xf32>, vector<4x2xf32>, vector<2x2xf32> -> vector<2x2xf32>
    %187 = arith.addf %184, %186 : vector<2x2xf32>
    %cst_44 = arith.constant 2.000000e+01 : f32
    %188 = vector.broadcast %cst_44 : f32 to vector<2x2xf32>
    %189 = arith.mulf %187, %188 : vector<2x2xf32>
    %c0_45 = arith.constant 0 : index
    %c0_46 = arith.constant 0 : index
    %190 = vector.load %arg18[%c0_45, %c0_46] : memref<2x10xf32, #tpu.memory_space<vmem>>, vector<2x2xf32>
    tpu.vector_store %arg18[%c0_45, %c0_46], %189 {strides = array<i32>} : memref<2x10xf32, #tpu.memory_space<vmem>>, vector<2x2xf32>,
    %c0_47 = arith.constant 0 : index
    %c2 = arith.constant 2 : index
    %191 = vector.load %arg18[%c0_47, %c2] : memref<2x10xf32, #tpu.memory_space<vmem>>, vector<2x8xf32>
    tpu.vector_store %arg18[%c0_47, %c2], %181 {strides = array<i32>} : memref<2x10xf32, #tpu.memory_space<vmem>>, vector<2x8xf32>,
    return
  }
  func.func @transform_0(%arg0: i32) -> (i32, i32) {
    %c0_i32 = arith.constant 0 : i32
    %c0_i32_0 = arith.constant 0 : i32
    %c0_i32_1 = arith.constant 0 : i32
    return %c0_i32, %c0_i32_0 : i32, i32
  }
  func.func @transform_1(%arg0: i32) -> (i32, i32) {
    %c0_i32 = arith.constant 0 : i32
    %c0_i32_0 = arith.constant 0 : i32
    %c0_i32_1 = arith.constant 0 : i32
    return %c0_i32, %c0_i32_0 : i32, i32
  }
  func.func @transform_2(%arg0: i32) -> (i32, i32) {
    %c0_i32 = arith.constant 0 : i32
    %c0_i32_0 = arith.constant 0 : i32
    %c0_i32_1 = arith.constant 0 : i32
    return %c0_i32, %c0_i32_0 : i32, i32
  }
  func.func @transform_3(%arg0: i32) -> (i32, i32) {
    %c0_i32 = arith.constant 0 : i32
    %c0_i32_0 = arith.constant 0 : i32
    %c0_i32_1 = arith.constant 0 : i32
    return %c0_i32, %c0_i32_0 : i32, i32
  }
  func.func @transform_4(%arg0: i32) -> (i32, i32) {
    %c0_i32 = arith.constant 0 : i32
    %c0_i32_0 = arith.constant 0 : i32
    %c0_i32_1 = arith.constant 0 : i32
    return %c0_i32, %c0_i32_0 : i32, i32
  }
  func.func @transform_5(%arg0: i32) -> (i32, i32) {
    %c0_i32 = arith.constant 0 : i32
    %c0_i32_0 = arith.constant 0 : i32
    %c0_i32_1 = arith.constant 0 : i32
    return %c0_i32, %c0_i32_0 : i32, i32
  }
  func.func @transform_6(%arg0: i32) -> (i32, i32) {
    %c0_i32 = arith.constant 0 : i32
    %c0_i32_0 = arith.constant 0 : i32
    %c0_i32_1 = arith.constant 0 : i32
    return %c0_i32, %c0_i32_0 : i32, i32
  }
  func.func @transform_7(%arg0: i32) -> (i32, i32) {
    %c0_i32 = arith.constant 0 : i32
    %c0_i32_0 = arith.constant 0 : i32
    %c0_i32_1 = arith.constant 0 : i32
    return %c0_i32, %c0_i32_0 : i32, i32
  }
  func.func @transform_8(%arg0: i32) -> (i32, i32) {
    %c0_i32 = arith.constant 0 : i32
    %c0_i32_0 = arith.constant 0 : i32
    %c0_i32_1 = arith.constant 0 : i32
    return %c0_i32, %c0_i32_0 : i32, i32
  }
  func.func @transform_9(%arg0: i32) -> (i32, i32) {
    %c0_i32 = arith.constant 0 : i32
    %c0_i32_0 = arith.constant 0 : i32
    %c0_i32_1 = arith.constant 0 : i32
    return %c0_i32, %c0_i32_0 : i32, i32
  }
  func.func @transform_10(%arg0: i32) -> (i32, i32) {
    %c0_i32 = arith.constant 0 : i32
    %c0_i32_0 = arith.constant 0 : i32
    %c0_i32_1 = arith.constant 0 : i32
    return %c0_i32, %c0_i32_0 : i32, i32
  }
  func.func @transform_11(%arg0: i32) -> (i32, i32) {
    %c0_i32 = arith.constant 0 : i32
    %c0_i32_0 = arith.constant 0 : i32
    %c0_i32_1 = arith.constant 0 : i32
    return %c0_i32, %c0_i32_0 : i32, i32
  }
  func.func @transform_12(%arg0: i32) -> (i32, i32) {
    %c0_i32 = arith.constant 0 : i32
    %c0_i32_0 = arith.constant 0 : i32
    %c0_i32_1 = arith.constant 0 : i32
    return %c0_i32, %c0_i32_0 : i32, i32
  }
  func.func @transform_13(%arg0: i32) -> (i32, i32) {
    %c0_i32 = arith.constant 0 : i32
    %c0_i32_0 = arith.constant 0 : i32
    %c0_i32_1 = arith.constant 0 : i32
    return %c0_i32, %c0_i32_0 : i32, i32
  }
  func.func @transform_14(%arg0: i32) -> (i32, i32) {
    %c0_i32 = arith.constant 0 : i32
    %c0_i32_0 = arith.constant 0 : i32
    %c0_i32_1 = arith.constant 0 : i32
    return %c0_i32, %c0_i32_0 : i32, i32
  }
  func.func @transform_15(%arg0: i32) -> (i32, i32) {
    %c0_i32 = arith.constant 0 : i32
    %c0_i32_0 = arith.constant 0 : i32
    %c0_i32_1 = arith.constant 0 : i32
    return %c0_i32, %c0_i32_0 : i32, i32
  }
  func.func @transform_16(%arg0: i32) -> (i32, i32) {
    %c0_i32 = arith.constant 0 : i32
    %c0_i32_0 = arith.constant 0 : i32
    %c0_i32_1 = arith.constant 0 : i32
    return %c0_i32, %c0_i32_0 : i32, i32
  }
  func.func @transform_17(%arg0: i32) -> (i32, i32) {
    %c0_i32 = arith.constant 0 : i32
    %c0_i32_0 = arith.constant 0 : i32
    %c0_i32_1 = arith.constant 0 : i32
    return %c0_i32, %c0_i32_0 : i32, i32
  }
}

</mosaic_0001>

<llo_original>
// kernel: tpu_custom_call.1
$region0: #{tpu_custom_call.1}
  #allocation0 [shape = 'u32[]', space=smem, size = 0x4, offset = 0x4, fixed_abs, tag = 'smem constant byte address 0x4 - core index']
  #allocation1 [shape = 'u32[144,128]{1,0:T(1,128)}', space=vmem, size = 0x12000, scoped, tag = 'internal scratch']
  %s0 = inlined_call_operand.hbm [shape: f32[2,4], index: 0, kind: input, shape index: {}]
  %s1 = inlined_call_operand.hbm [shape: f32[1,2], index: 1, kind: input, shape index: {}]
  %s2 = inlined_call_operand.hbm [shape: f32[1,4], index: 2, kind: input, shape index: {}]
  %s3 = inlined_call_operand.hbm [shape: f32[1,8], index: 3, kind: input, shape index: {}]
  %s4 = inlined_call_operand.hbm [shape: f32[4,4], index: 4, kind: input, shape index: {}]
  %s5 = inlined_call_operand.hbm [shape: f32[2,4], index: 5, kind: input, shape index: {}]
  %s6 = inlined_call_operand.vmem [shape: f32[8,8], index: 6, kind: input, shape index: {}]
  %s7 = inlined_call_operand.vmem [shape: f32[4,8], index: 7, kind: input, shape index: {}]
  %s8 = inlined_call_operand.vmem [shape: f32[1,8], index: 8, kind: input, shape index: {}]
  %s9 = inlined_call_operand.vmem [shape: f32[8,8], index: 9, kind: input, shape index: {}]
  %s10 = inlined_call_operand.vmem [shape: f32[8,8], index: 10, kind: input, shape index: {}]
  %s11 = inlined_call_operand.vmem [shape: f32[8,8], index: 11, kind: input, shape index: {}]
  %s12 = inlined_call_operand.vmem [shape: f32[4,8], index: 12, kind: input, shape index: {}]
  %s13 = inlined_call_operand.vmem [shape: f32[8,8], index: 13, kind: input, shape index: {}]
  %s14 = inlined_call_operand.vmem [shape: f32[8,2], index: 14, kind: input, shape index: {}]
  %s15 = inlined_call_operand.vmem [shape: f32[8,2], index: 15, kind: input, shape index: {}]
  %s16 = inlined_call_operand.vmem [shape: f32[4,2], index: 16, kind: input, shape index: {}]
  %s17 = inlined_call_operand.hbm [shape: f32[2,10], index: 17, kind: output, shape index: {}]
  %s18 = sld [smem:[#allocation0]]
  $region102: #{tpu_custom_call.1} parent=0
    _
  %s20 = ssub.s32 1, %s18
  %s21 = scalar_select 0, %s20, %s18
  $region1: #{tpu_custom_call.1} parent=0
    #allocation2 [shape = 'u8[1024]{0}', space=vmem, size = 0x400, scoped, tag = 'input window, operand 0, single buffered']
    #allocation3 [shape = 's32[1]{0}', space=sflag, size = 0x4, scoped, tag = 'scoped memory for tpu_custom_call.1']
    #allocation4 [shape = 's32[1]{0}', space=sflag, size = 0x4, scoped, tag = 'scoped memory for tpu_custom_call.1']
    #allocation5 [shape = 'u8[512]{0}', space=vmem, size = 0x400, scoped, tag = 'input window, operand 1, single buffered']
    #allocation6 [shape = 's32[1]{0}', space=sflag, size = 0x4, scoped, tag = 'scoped memory for tpu_custom_call.1']
    #allocation7 [shape = 'u8[512]{0}', space=vmem, size = 0x400, scoped, tag = 'input window, operand 2, single buffered']
    #allocation8 [shape = 'u8[512]{0}', space=vmem, size = 0x400, scoped, tag = 'input window, operand 3, single buffered']
    #allocation9 [shape = 's32[1]{0}', space=sflag, size = 0x4, scoped, tag = 'scoped memory for tpu_custom_call.1']
    #allocation10 [shape = 'u8[2048]{0}', space=vmem, size = 0x800, scoped, tag = 'input window, operand 4, single buffered']
    #allocation11 [shape = 'u8[1024]{0}', space=vmem, size = 0x400, scoped, tag = 'input window, operand 5, single buffered']
    #allocation12 [shape = 's32[1]{0}', space=sflag, size = 0x4, scoped, tag = 'scoped memory for tpu_custom_call.1']
    #allocation13 [shape = 'u8[1024]{0}', space=vmem, size = 0x400, scoped, tag = 'output window, operand 0, single buffered']
    %22 = vsyncpa [#allocation3], 0
    %23 = vsyncpa [#allocation6], 0
    %24 = vsyncpa [#allocation9], 0
    %25 = vsyncpa [#allocation12], 0
    %26 = vsyncpa [#allocation4], 0
    // Predicated region
    $region2: #{tpu_custom_call.1} parent=1 // pred_check
      _
    $region3: #{tpu_custom_call.1} parent=1 // pred_check_branch
      %28 = sbr.rel (0) target = $region5
    $region4: #{tpu_custom_call.1} parent=1 // pred_region
      %s30 = ssub.s32 32, 32
      %31 = vsyncadd [#allocation3], %s30
      %s33 = sshll.u32 [#allocation2], 4
      %s34 = int_to_ptr.vmem [resolvable:$true] %s33
      %36 = dma.hbm_to_vmem [thread:$0]  %s0, 32, %s34, [#allocation3]
    $region5: #{tpu_custom_call.1} parent=1 // pred_fallthru
      _
    // Predicated region
    $region6: #{tpu_custom_call.1} parent=1 // pred_check
      _
    $region7: #{tpu_custom_call.1} parent=1 // pred_check_branch
      %38 = sbr.rel (0) target = $region9
    $region8: #{tpu_custom_call.1} parent=1 // pred_region
      %s40 = ssub.s32 16, 16
      %41 = vsyncadd [#allocation6], %s40
      %s43 = sshll.u32 [#allocation5], 4
      %s44 = int_to_ptr.vmem [resolvable:$true] %s43
      %46 = dma.hbm_to_vmem [thread:$0]  %s1, 16, %s44, [#allocation6]
    $region9: #{tpu_custom_call.1} parent=1 // pred_fallthru
      _
    // Predicated region
    $region10: #{tpu_custom_call.1} parent=1 // pred_check
      _
    $region11: #{tpu_custom_call.1} parent=1 // pred_check_branch
      %48 = sbr.rel (0) target = $region13
    $region12: #{tpu_custom_call.1} parent=1 // pred_region
      %s50 = ssub.s32 16, 16
      %51 = vsyncadd [#allocation6], %s50
      %s53 = sshll.u32 [#allocation7], 4
      %s54 = int_to_ptr.vmem [resolvable:$true] %s53
      %56 = dma.hbm_to_vmem [thread:$0]  %s2, 16, %s54, [#allocation6]
    $region13: #{tpu_custom_call.1} parent=1 // pred_fallthru
      _
    // Predicated region
    $region14: #{tpu_custom_call.1} parent=1 // pred_check
      _
    $region15: #{tpu_custom_call.1} parent=1 // pred_check_branch
      %58 = sbr.rel (0) target = $region17
    $region16: #{tpu_custom_call.1} parent=1 // pred_region
      %s60 = ssub.s32 16, 16
      %61 = vsyncadd [#allocation9], %s60
      %s63 = sshll.u32 [#allocation8], 4
      %s64 = int_to_ptr.vmem [resolvable:$true] %s63
      %66 = dma.hbm_to_vmem [thread:$0]  %s3, 16, %s64, [#allocation9]
    $region17: #{tpu_custom_call.1} parent=1 // pred_fallthru
      _
    // Predicated region
    $region18: #{tpu_custom_call.1} parent=1 // pred_check
      _
    $region19: #{tpu_custom_call.1} parent=1 // pred_check_branch
      %68 = sbr.rel (0) target = $region21
    $region20: #{tpu_custom_call.1} parent=1 // pred_region
      %s70 = ssub.s32 64, 64
      %71 = vsyncadd [#allocation9], %s70
      %s73 = sshll.u32 [#allocation10], 4
      %s74 = int_to_ptr.vmem [resolvable:$true] %s73
      %76 = dma.hbm_to_vmem [thread:$0]  %s4, 64, %s74, [#allocation9]
    $region21: #{tpu_custom_call.1} parent=1 // pred_fallthru
      _
    // Predicated region
    $region22: #{tpu_custom_call.1} parent=1 // pred_check
      _
    $region23: #{tpu_custom_call.1} parent=1 // pred_check_branch
      %78 = sbr.rel (0) target = $region25
    $region24: #{tpu_custom_call.1} parent=1 // pred_region
      %s80 = ssub.s32 32, 32
      %81 = vsyncadd [#allocation12], %s80
      %s83 = sshll.u32 [#allocation11], 4
      %s84 = int_to_ptr.vmem [resolvable:$true] %s83
      %86 = dma.hbm_to_vmem [thread:$0]  %s5, 32, %s84, [#allocation12]
    $region25: #{tpu_custom_call.1} parent=1 // pred_fallthru
      _
    // Predicated region
    $region26: #{tpu_custom_call.1} parent=1 // pred_check
      _
    $region27: #{tpu_custom_call.1} parent=1 // pred_check_branch
      %88 = sbr.rel (0) target = $region29
    $region28: #{tpu_custom_call.1} parent=1 // pred_region
      _
    $region29: #{tpu_custom_call.1} parent=1 // pred_fallthru
      _
    // Predicated region
    $region30: #{tpu_custom_call.1} parent=1 // pred_check
      _
    $region31: #{tpu_custom_call.1} parent=1 // pred_check_branch
      %90 = sbr.rel (0) target = $region33
    $region32: #{tpu_custom_call.1} parent=1 // pred_region
      _
    $region33: #{tpu_custom_call.1} parent=1 // pred_fallthru
      _
    // Predicated region
    $region34: #{tpu_custom_call.1} parent=1 // pred_check
      _
    $region35: #{tpu_custom_call.1} parent=1 // pred_check_branch
      %92 = sbr.rel (0) target = $region37
    $region36: #{tpu_custom_call.1} parent=1 // pred_region
      _
    $region37: #{tpu_custom_call.1} parent=1 // pred_fallthru
      _
    // Predicated region
    $region38: #{tpu_custom_call.1} parent=1 // pred_check
      _
    $region39: #{tpu_custom_call.1} parent=1 // pred_check_branch
      %94 = sbr.rel (0) target = $region41
    $region40: #{tpu_custom_call.1} parent=1 // pred_region
      _
    $region41: #{tpu_custom_call.1} parent=1 // pred_fallthru
      _
    // Predicated region
    $region42: #{tpu_custom_call.1} parent=1 // pred_check
      _
    $region43: #{tpu_custom_call.1} parent=1 // pred_check_branch
      %96 = sbr.rel (0) target = $region45
    $region44: #{tpu_custom_call.1} parent=1 // pred_region
      _
    $region45: #{tpu_custom_call.1} parent=1 // pred_fallthru
      _
    // Predicated region
    $region46: #{tpu_custom_call.1} parent=1 // pred_check
      _
    $region47: #{tpu_custom_call.1} parent=1 // pred_check_branch
      %98 = sbr.rel (0) target = $region49
    $region48: #{tpu_custom_call.1} parent=1 // pred_region
      _
    $region49: #{tpu_custom_call.1} parent=1 // pred_fallthru
      _
    // Predicated region
    $region50: #{tpu_custom_call.1} parent=1 // pred_check
      _
    $region51: #{tpu_custom_call.1} parent=1 // pred_check_branch
      %100 = sbr.rel (0) target = $region53
    $region52: #{tpu_custom_call.1} parent=1 // pred_region
      _
    $region53: #{tpu_custom_call.1} parent=1 // pred_fallthru
      _
    // Predicated region
    $region54: #{tpu_custom_call.1} parent=1 // pred_check
      _
    $region55: #{tpu_custom_call.1} parent=1 // pred_check_branch
      %102 = sbr.rel (0) target = $region57
    $region56: #{tpu_custom_call.1} parent=1 // pred_region
      _
    $region57: #{tpu_custom_call.1} parent=1 // pred_fallthru
      _
    // Predicated region
    $region58: #{tpu_custom_call.1} parent=1 // pred_check
      _
    $region59: #{tpu_custom_call.1} parent=1 // pred_check_branch
      %104 = sbr.rel (0) target = $region61
    $region60: #{tpu_custom_call.1} parent=1 // pred_region
      _
    $region61: #{tpu_custom_call.1} parent=1 // pred_fallthru
      _
    // Predicated region
    $region62: #{tpu_custom_call.1} parent=1 // pred_check
      _
    $region63: #{tpu_custom_call.1} parent=1 // pred_check_branch
      %106 = sbr.rel (0) target = $region65
    $region64: #{tpu_custom_call.1} parent=1 // pred_region
      _
    $region65: #{tpu_custom_call.1} parent=1 // pred_fallthru
      _
    // Predicated region
    $region66: #{tpu_custom_call.1} parent=1 // pred_check
      _
    $region67: #{tpu_custom_call.1} parent=1 // pred_check_branch
      %108 = sbr.rel (0) target = $region69
    $region68: #{tpu_custom_call.1} parent=1 // pred_region
      _
    $region69: #{tpu_custom_call.1} parent=1 // pred_fallthru
      _
    // Predicated region
    $region70: #{tpu_custom_call.1} parent=1 // pred_check
      _
    $region71: #{tpu_custom_call.1} parent=1 // pred_check_branch
      %110 = sbr.rel (0) target = $region73
    $region72: #{tpu_custom_call.1} parent=1 // pred_region
      %111 = dma.done [#allocation3], 32
    $region73: #{tpu_custom_call.1} parent=1 // pred_fallthru
      _
    // Predicated region
    $region74: #{tpu_custom_call.1} parent=1 // pred_check
      _
    $region75: #{tpu_custom_call.1} parent=1 // pred_check_branch
      %113 = sbr.rel (0) target = $region77
    $region76: #{tpu_custom_call.1} parent=1 // pred_region
      %114 = dma.done [#allocation6], 16
    $region77: #{tpu_custom_call.1} parent=1 // pred_fallthru
      _
    // Predicated region
    $region78: #{tpu_custom_call.1} parent=1 // pred_check
      _
    $region79: #{tpu_custom_call.1} parent=1 // pred_check_branch
      %116 = sbr.rel (0) target = $region81
    $region80: #{tpu_custom_call.1} parent=1 // pred_region
      %117 = dma.done [#allocation6], 16
    $region81: #{tpu_custom_call.1} parent=1 // pred_fallthru
      _
    // Predicated region
    $region82: #{tpu_custom_call.1} parent=1 // pred_check
      _
    $region83: #{tpu_custom_call.1} parent=1 // pred_check_branch
      %119 = sbr.rel (0) target = $region85
    $region84: #{tpu_custom_call.1} parent=1 // pred_region
      %120 = dma.done [#allocation9], 16
    $region85: #{tpu_custom_call.1} parent=1 // pred_fallthru
      _
    // Predicated region
    $region86: #{tpu_custom_call.1} parent=1 // pred_check
      _
    $region87: #{tpu_custom_call.1} parent=1 // pred_check_branch
      %122 = sbr.rel (0) target = $region89
    $region88: #{tpu_custom_call.1} parent=1 // pred_region
      %123 = dma.done [#allocation9], 64
    $region89: #{tpu_custom_call.1} parent=1 // pred_fallthru
      _
    // Predicated region
    $region90: #{tpu_custom_call.1} parent=1 // pred_check
      _
    $region91: #{tpu_custom_call.1} parent=1 // pred_check_branch
      %125 = sbr.rel (0) target = $region93
    $region92: #{tpu_custom_call.1} parent=1 // pred_region
      %126 = dma.done [#allocation12], 32
    $region93: #{tpu_custom_call.1} parent=1 // pred_fallthru
      _
    %v127 = vld [vmem:[#allocation2] sm:$0x3]
    %v128 = vld [vmem:[#allocation5] sm:$0x1]
    %v129 = vld [vmem:[#allocation7] sm:$0x1]
    %v130 = vld [vmem:[#allocation8] sm:$0x1]
    %v131 = vld [vmem:[#allocation10] sm:$0xf]
    %v132 = vld [vmem:[#allocation11] sm:$0x3]
    %vm133 = vcmask 15360
    %v135 = vsel %vm133, %v128, 0
    %vm137 = vcmask 1041408
    %v139 = vsel %vm137, %v132, 0
    %141 = vmatprep.subr.mxu0 0.0
    %142 = vmatpush1.msra.mxu0 %v139
    %143 = vmatprep.subr.mxu0 0.0
    %144 = vmatpush1.msra.mxu0 0.0
    %145 = vmatprep.subr.mxu0 0.0
    %146 = vmatpush1.msra.mxu0 0.0
    %147 = vmatprep.subr.mxu0 0.0
    %148 = vmatpush1.msra.mxu0 0.0
    %149 = vmatprep.subr.mxu0 0.0
    %150 = vmatpush1.msra.mxu0 0.0
    %151 = vmatprep.subr.mxu0 0.0
    %152 = vmatpush1.msra.mxu0 0.0
    %153 = vmatprep.subr.mxu0 0.0
    %154 = vmatpush1.msra.mxu0 0.0
    %155 = vmatprep.subr.mxu0 0.0
    %156 = vmatpush1.msra.mxu0 0.0
    %157 = vmatprep.subr.mxu0 0.0
    %158 = vmatpush1.msra.mxu0 0.0
    %159 = vmatprep.subr.mxu0 0.0
    %160 = vmatpush1.msra.mxu0 0.0
    %161 = vmatprep.subr.mxu0 0.0
    %162 = vmatpush1.msra.mxu0 0.0
    %163 = vmatprep.subr.mxu0 0.0
    %164 = vmatpush1.msra.mxu0 0.0
    %165 = vmatprep.subr.mxu0 0.0
    %166 = vmatpush1.msra.mxu0 0.0
    %167 = vmatprep.subr.mxu0 0.0
    %168 = vmatpush1.msra.mxu0 0.0
    %169 = vmatprep.subr.mxu0 0.0
    %170 = vmatpush1.msra.mxu0 0.0
    %171 = vmatprep.subr.mxu0 0.0
    %172 = vmatpush1.msra.mxu0 0.0
    %173 = vmatprep.subr.mxu0 0.0
    %174 = vmatpush1.msra.mxu0 0.0
    %175 = vmatprep.subr.mxu0 0.0
    %176 = vmatpush1.msra.mxu0 0.0
    %177 = vmatprep.subr.mxu0 0.0
    %178 = vmatpush1.msra.mxu0 0.0
    %179 = vmatprep.subr.mxu0 0.0
    %180 = vmatpush1.msra.mxu0 0.0
    %181 = vmatprep.subr.mxu0 0.0
    %182 = vmatpush1.msra.mxu0 0.0
    %183 = vmatprep.subr.mxu0 0.0
    %184 = vmatpush1.msra.mxu0 0.0
    %185 = vmatprep.subr.mxu0 0.0
    %186 = vmatpush1.msra.mxu0 0.0
    %187 = vmatprep.subr.mxu0 0.0
    %188 = vmatpush1.msra.mxu0 0.0
    %189 = vmatprep.subr.mxu0 0.0
    %190 = vmatpush1.msra.mxu0 0.0
    %191 = vmatprep.subr.mxu0 0.0
    %192 = vmatpush1.msra.mxu0 0.0
    %193 = vmatprep.subr.mxu0 0.0
    %194 = vmatpush1.msra.mxu0 0.0
    %195 = vmatprep.subr.mxu0 0.0
    %196 = vmatpush1.msra.mxu0 0.0
    %197 = vmatprep.subr.mxu0 0.0
    %198 = vmatpush1.msra.mxu0 0.0
    %199 = vmatprep.subr.mxu0 0.0
    %200 = vmatpush1.msra.mxu0 0.0
    %201 = vmatprep.subr.mxu0 0.0
    %202 = vmatpush1.msra.mxu0 0.0
    %203 = vmatprep.subr.mxu0 0.0
    %204 = vmatpush1.msra.mxu0 0.0
    %205 = vmatprep.mubr.f32.mxu0 0.0
    %206 = vmatmul.mubr.f32.gmra.mrb[0].mxu0 %v135
    %v207 = vpop.f32.mrb[0].mxu0
    %v208 = vadd.f32 0.0, %v207
    %v209 = vpop.f32.mrb[0].mxu0
    %210 = vdwg.mxu0
    %vm211 = vcmask 31744
    %v213 = vsel %vm211, %v129, 0
    %vm215 = vcmask 1043456
    %v217 = vsel %vm215, %v131, 0
    %219 = vmatprep.subr.mxu0 0.0
    %220 = vmatpush1.msra.mxu0 %v217
    %221 = vmatprep.subr.mxu0 0.0
    %222 = vmatpush1.msra.mxu0 0.0
    %223 = vmatprep.subr.mxu0 0.0
    %224 = vmatpush1.msra.mxu0 0.0
    %225 = vmatprep.subr.mxu0 0.0
    %226 = vmatpush1.msra.mxu0 0.0
    %227 = vmatprep.subr.mxu0 0.0
    %228 = vmatpush1.msra.mxu0 0.0
    %229 = vmatprep.subr.mxu0 0.0
    %230 = vmatpush1.msra.mxu0 0.0
    %231 = vmatprep.subr.mxu0 0.0
    %232 = vmatpush1.msra.mxu0 0.0
    %233 = vmatprep.subr.mxu0 0.0
    %234 = vmatpush1.msra.mxu0 0.0
    %235 = vmatprep.subr.mxu0 0.0
    %236 = vmatpush1.msra.mxu0 0.0
    %237 = vmatprep.subr.mxu0 0.0
    %238 = vmatpush1.msra.mxu0 0.0
    %239 = vmatprep.subr.mxu0 0.0
    %240 = vmatpush1.msra.mxu0 0.0
    %241 = vmatprep.subr.mxu0 0.0
    %242 = vmatpush1.msra.mxu0 0.0
    %243 = vmatprep.subr.mxu0 0.0
    %244 = vmatpush1.msra.mxu0 0.0
    %245 = vmatprep.subr.mxu0 0.0
    %246 = vmatpush1.msra.mxu0 0.0
    %247 = vmatprep.subr.mxu0 0.0
    %248 = vmatpush1.msra.mxu0 0.0
    %249 = vmatprep.subr.mxu0 0.0
    %250 = vmatpush1.msra.mxu0 0.0
    %251 = vmatprep.subr.mxu0 0.0
    %252 = vmatpush1.msra.mxu0 0.0
    %253 = vmatprep.subr.mxu0 0.0
    %254 = vmatpush1.msra.mxu0 0.0
    %255 = vmatprep.subr.mxu0 0.0
    %256 = vmatpush1.msra.mxu0 0.0
    %257 = vmatprep.subr.mxu0 0.0
    %258 = vmatpush1.msra.mxu0 0.0
    %259 = vmatprep.subr.mxu0 0.0
    %260 = vmatpush1.msra.mxu0 0.0
    %261 = vmatprep.subr.mxu0 0.0
    %262 = vmatpush1.msra.mxu0 0.0
    %263 = vmatprep.subr.mxu0 0.0
    %264 = vmatpush1.msra.mxu0 0.0
    %265 = vmatprep.subr.mxu0 0.0
    %266 = vmatpush1.msra.mxu0 0.0
    %267 = vmatprep.subr.mxu0 0.0
    %268 = vmatpush1.msra.mxu0 0.0
    %269 = vmatprep.subr.mxu0 0.0
    %270 = vmatpush1.msra.mxu0 0.0
    %271 = vmatprep.subr.mxu0 0.0
    %272 = vmatpush1.msra.mxu0 0.0
    %273 = vmatprep.subr.mxu0 0.0
    %274 = vmatpush1.msra.mxu0 0.0
    %275 = vmatprep.subr.mxu0 0.0
    %276 = vmatpush1.msra.mxu0 0.0
    %277 = vmatprep.subr.mxu0 0.0
    %278 = vmatpush1.msra.mxu0 0.0
    %279 = vmatprep.subr.mxu0 0.0
    %280 = vmatpush1.msra.mxu0 0.0
    %281 = vmatprep.subr.mxu0 0.0
    %282 = vmatpush1.msra.mxu0 0.0
    %283 = vmatprep.mubr.f32.mxu0 0.0
    %284 = vmatmul.mubr.f32.gmra.mrb[0].mxu0 %v213
    %v285 = vpop.f32.mrb[0].mxu0
    %v286 = vadd.f32 %v208, %v285
    %v287 = vpop.f32.mrb[0].mxu0
    %288 = vdwg.mxu0
    %v289 = vlaneseq
    %v290 = vshrl.u32 %v289, 7
    %v291 = vsub.s32 0, %v290
    %v292 = vrot.slane %v286, %v291
    %v293 = vsub.f32 %v127, %v292
    %v294 = vld [vmem:[%s8] sm:$0x1]
    %v295 = vld [vmem:[%s6] sm:$0xff]
    %vm296 = vcmask 64512
    %v298 = vsel %vm296, %v130, 0
    %300 = vmatprep.subr.mxu0 0.0
    %301 = vmatpush1.msra.mxu0 %v295
    %302 = vmatprep.subr.mxu0 0.0
    %303 = vmatpush1.msra.mxu0 0.0
    %304 = vmatprep.subr.mxu0 0.0
    %305 = vmatpush1.msra.mxu0 0.0
    %306 = vmatprep.subr.mxu0 0.0
    %307 = vmatpush1.msra.mxu0 0.0
    %308 = vmatprep.subr.mxu0 0.0
    %309 = vmatpush1.msra.mxu0 0.0
    %310 = vmatprep.subr.mxu0 0.0
    %311 = vmatpush1.msra.mxu0 0.0
    %312 = vmatprep.subr.mxu0 0.0
    %313 = vmatpush1.msra.mxu0 0.0
    %314 = vmatprep.subr.mxu0 0.0
    %315 = vmatpush1.msra.mxu0 0.0
    %316 = vmatprep.subr.mxu0 0.0
    %317 = vmatpush1.msra.mxu0 0.0
    %318 = vmatprep.subr.mxu0 0.0
    %319 = vmatpush1.msra.mxu0 0.0
    %320 = vmatprep.subr.mxu0 0.0
    %321 = vmatpush1.msra.mxu0 0.0
    %322 = vmatprep.subr.mxu0 0.0
    %323 = vmatpush1.msra.mxu0 0.0
    %324 = vmatprep.subr.mxu0 0.0
    %325 = vmatpush1.msra.mxu0 0.0
    %326 = vmatprep.subr.mxu0 0.0
    %327 = vmatpush1.msra.mxu0 0.0
    %328 = vmatprep.subr.mxu0 0.0
    %329 = vmatpush1.msra.mxu0 0.0
    %330 = vmatprep.subr.mxu0 0.0
    %331 = vmatpush1.msra.mxu0 0.0
    %332 = vmatprep.subr.mxu0 0.0
    %333 = vmatpush1.msra.mxu0 0.0
    %334 = vmatprep.subr.mxu0 0.0
    %335 = vmatpush1.msra.mxu0 0.0
    %336 = vmatprep.subr.mxu0 0.0
    %337 = vmatpush1.msra.mxu0 0.0
    %338 = vmatprep.subr.mxu0 0.0
    %339 = vmatpush1.msra.mxu0 0.0
    %340 = vmatprep.subr.mxu0 0.0
    %341 = vmatpush1.msra.mxu0 0.0
    %342 = vmatprep.subr.mxu0 0.0
    %343 = vmatpush1.msra.mxu0 0.0
    %344 = vmatprep.subr.mxu0 0.0
    %345 = vmatpush1.msra.mxu0 0.0
    %346 = vmatprep.subr.mxu0 0.0
    %347 = vmatpush1.msra.mxu0 0.0
    %348 = vmatprep.subr.mxu0 0.0
    %349 = vmatpush1.msra.mxu0 0.0
    %350 = vmatprep.subr.mxu0 0.0
    %351 = vmatpush1.msra.mxu0 0.0
    %352 = vmatprep.subr.mxu0 0.0
    %353 = vmatpush1.msra.mxu0 0.0
    %354 = vmatprep.subr.mxu0 0.0
    %355 = vmatpush1.msra.mxu0 0.0
    %356 = vmatprep.subr.mxu0 0.0
    %357 = vmatpush1.msra.mxu0 0.0
    %358 = vmatprep.subr.mxu0 0.0
    %359 = vmatpush1.msra.mxu0 0.0
    %360 = vmatprep.subr.mxu0 0.0
    %361 = vmatpush1.msra.mxu0 0.0
    %362 = vmatprep.subr.mxu0 0.0
    %363 = vmatpush1.msra.mxu0 0.0
    %364 = vmatprep.mubr.f32.mxu0 0.0
    %365 = vmatmul.mubr.f32.gmra.mrb[0].mxu0 %v298
    %v366 = vpop.f32.mrb[0].mxu0
    %v367 = vadd.f32 0.0, %v366
    %v368 = vpop.f32.mrb[0].mxu0
    %369 = vdwg.mxu0
    %v370 = vld [vmem:[%s7] sm:$0xf]
    %v372 = vsel %vm211, %v293, 0
    %v375 = vsel %vm215, %v370, 0
    %377 = vmatprep.subr.mxu0 0.0
    %378 = vmatpush1.msra.mxu0 %v375
    %379 = vmatprep.subr.mxu0 0.0
    %380 = vmatpush1.msra.mxu0 0.0
    %381 = vmatprep.subr.mxu0 0.0
    %382 = vmatpush1.msra.mxu0 0.0
    %383 = vmatprep.subr.mxu0 0.0
    %384 = vmatpush1.msra.mxu0 0.0
    %385 = vmatprep.subr.mxu0 0.0
    %386 = vmatpush1.msra.mxu0 0.0
    %387 = vmatprep.subr.mxu0 0.0
    %388 = vmatpush1.msra.mxu0 0.0
    %389 = vmatprep.subr.mxu0 0.0
    %390 = vmatpush1.msra.mxu0 0.0
    %391 = vmatprep.subr.mxu0 0.0
    %392 = vmatpush1.msra.mxu0 0.0
    %393 = vmatprep.subr.mxu0 0.0
    %394 = vmatpush1.msra.mxu0 0.0
    %395 = vmatprep.subr.mxu0 0.0
    %396 = vmatpush1.msra.mxu0 0.0
    %397 = vmatprep.subr.mxu0 0.0
    %398 = vmatpush1.msra.mxu0 0.0
    %399 = vmatprep.subr.mxu0 0.0
    %400 = vmatpush1.msra.mxu0 0.0
    %401 = vmatprep.subr.mxu0 0.0
    %402 = vmatpush1.msra.mxu0 0.0
    %403 = vmatprep.subr.mxu0 0.0
    %404 = vmatpush1.msra.mxu0 0.0
    %405 = vmatprep.subr.mxu0 0.0
    %406 = vmatpush1.msra.mxu0 0.0
    %407 = vmatprep.subr.mxu0 0.0
    %408 = vmatpush1.msra.mxu0 0.0
    %409 = vmatprep.subr.mxu0 0.0
    %410 = vmatpush1.msra.mxu0 0.0
    %411 = vmatprep.subr.mxu0 0.0
    %412 = vmatpush1.msra.mxu0 0.0
    %413 = vmatprep.subr.mxu0 0.0
    %414 = vmatpush1.msra.mxu0 0.0
    %415 = vmatprep.subr.mxu0 0.0
    %416 = vmatpush1.msra.mxu0 0.0
    %417 = vmatprep.subr.mxu0 0.0
    %418 = vmatpush1.msra.mxu0 0.0
    %419 = vmatprep.subr.mxu0 0.0
    %420 = vmatpush1.msra.mxu0 0.0
    %421 = vmatprep.subr.mxu0 0.0
    %422 = vmatpush1.msra.mxu0 0.0
    %423 = vmatprep.subr.mxu0 0.0
    %424 = vmatpush1.msra.mxu0 0.0
    %425 = vmatprep.subr.mxu0 0.0
    %426 = vmatpush1.msra.mxu0 0.0
    %427 = vmatprep.subr.mxu0 0.0
    %428 = vmatpush1.msra.mxu0 0.0
    %429 = vmatprep.subr.mxu0 0.0
    %430 = vmatpush1.msra.mxu0 0.0
    %431 = vmatprep.subr.mxu0 0.0
    %432 = vmatpush1.msra.mxu0 0.0
    %433 = vmatprep.subr.mxu0 0.0
    %434 = vmatpush1.msra.mxu0 0.0
    %435 = vmatprep.subr.mxu0 0.0
    %436 = vmatpush1.msra.mxu0 0.0
    %437 = vmatprep.subr.mxu0 0.0
    %438 = vmatpush1.msra.mxu0 0.0
    %439 = vmatprep.subr.mxu0 0.0
    %440 = vmatpush1.msra.mxu0 0.0
    %441 = vmatprep.mubr.f32.mxu0 0.0
    %442 = vmatmul.mubr.f32.gmra.mrb[0].mxu0 %v372
    %v443 = vpop.f32.mrb[0].mxu0
    %v444 = vadd.f32 0.0, %v443
    %v445 = vpop.f32.mrb[0].mxu0
    %446 = vdwg.mxu0
    %v447 = vlaneseq
    %v448 = vshrl.u32 %v447, 7
    %v449 = vsub.s32 0, %v448
    %v450 = vrot.slane %v367, %v449
    %v451 = vadd.f32 %v450, %v444
    %v453 = vlaneseq
    %v454 = vshrl.u32 %v453, 7
    %v455 = vsub.s32 0, %v454
    %v456 = vrot.slane %v294, %v455
    %v458 = vmul.f32 %v451, %v456
    %v459 = vld [vmem:[%s9] sm:$0xff]
    %v460 = vld [vmem:[%s11] sm:$0xff]
    %v461 = vld [vmem:[%s15] sm:$0xff]
    %v462 = vadd.f32 %v458, 0.0
    %v463 = vtanh.pop %v462
    %465 = vset.pattern.permute.xlu0 0
    %466 = vperm.xlu0 %465, %v463
    %v467 = vpop.permute.xlu0 %466
    %v469 = vlaneseq
    %v470 = vshrl.u32 %v469, 7
    %v471 = vsub.s32 0, %v470
    %v472 = vrot.slane %v459, %v471
    %v473 = vmul.f32 %v467, %v472
    %v474 = vadd.f32 %v473, 0.0
    %v475 = vlaneseq
    %v476 = vshrl.u32 %v475, 7
    %v477 = vsub.s32 0, %v476
    %v478 = vrot.slane %v460, %v477
    %v479 = vmul.f32 %v467, %v478
    %v480 = vadd.f32 %v479, 0.0
    %v481 = vlaneseq
    %v482 = vshrl.u32 %v481, 7
    %v483 = vsub.s32 0, %v482
    %v484 = vrot.slane %v461, %v483
    %v485 = vmul.f32 %v467, %v484
    %v486 = vadd.f32 %v485, 0.0
    %v487 = vadd.f32 %v458, %v474
    %v488 = vtanh.pop %v487
    %490 = vset.pattern.permute.xlu0 1
    %491 = vperm.xlu0 %490, %v488
    %v492 = vpop.permute.xlu0 %491
    %v494 = vlaneseq
    %v495 = vshrl.u32 %v494, 7
    %v496 = vsub.s32 1, %v495
    %v497 = vrot.slane %v459, %v496
    %v498 = vmul.f32 %v492, %v497
    %v499 = vadd.f32 %v474, %v498
    %v500 = vlaneseq
    %v501 = vshrl.u32 %v500, 7
    %v502 = vsub.s32 1, %v501
    %v503 = vrot.slane %v460, %v502
    %v504 = vmul.f32 %v492, %v503
    %v505 = vadd.f32 %v480, %v504
    %v506 = vlaneseq
    %v507 = vshrl.u32 %v506, 7
    %v508 = vsub.s32 1, %v507
    %v509 = vrot.slane %v461, %v508
    %v510 = vmul.f32 %v492, %v509
    %v511 = vadd.f32 %v486, %v510
    %v512 = vadd.f32 %v458, %v499
    %v513 = vtanh.pop %v512
    %515 = vset.pattern.permute.xlu0 2
    %516 = vperm.xlu0 %515, %v513
    %v517 = vpop.permute.xlu0 %516
    %v519 = vlaneseq
    %v520 = vshrl.u32 %v519, 7
    %v521 = vsub.s32 2, %v520
    %v522 = vrot.slane %v459, %v521
    %v523 = vmul.f32 %v517, %v522
    %v524 = vadd.f32 %v499, %v523
    %v525 = vlaneseq
    %v526 = vshrl.u32 %v525, 7
    %v527 = vsub.s32 2, %v526
    %v528 = vrot.slane %v460, %v527
    %v529 = vmul.f32 %v517, %v528
    %v530 = vadd.f32 %v505, %v529
    %v531 = vlaneseq
    %v532 = vshrl.u32 %v531, 7
    %v533 = vsub.s32 2, %v532
    %v534 = vrot.slane %v461, %v533
    %v535 = vmul.f32 %v517, %v534
    %v536 = vadd.f32 %v511, %v535
    %v537 = vadd.f32 %v458, %v524
    %v538 = vtanh.pop %v537
    %540 = vset.pattern.permute.xlu0 3
    %541 = vperm.xlu0 %540, %v538
    %v542 = vpop.permute.xlu0 %541
    %v544 = vlaneseq
    %v545 = vshrl.u32 %v544, 7
    %v546 = vsub.s32 3, %v545
    %v547 = vrot.slane %v459, %v546
    %v548 = vmul.f32 %v542, %v547
    %v549 = vadd.f32 %v524, %v548
    %v550 = vlaneseq
    %v551 = vshrl.u32 %v550, 7
    %v552 = vsub.s32 3, %v551
    %v553 = vrot.slane %v460, %v552
    %v554 = vmul.f32 %v542, %v553
    %v555 = vadd.f32 %v530, %v554
    %v556 = vlaneseq
    %v557 = vshrl.u32 %v556, 7
    %v558 = vsub.s32 3, %v557
    %v559 = vrot.slane %v461, %v558
    %v560 = vmul.f32 %v542, %v559
    %v561 = vadd.f32 %v536, %v560
    %v562 = vadd.f32 %v458, %v549
    %v563 = vtanh.pop %v562
    %565 = vset.pattern.permute.xlu0 4
    %566 = vperm.xlu0 %565, %v563
    %v567 = vpop.permute.xlu0 %566
    %v569 = vlaneseq
    %v570 = vshrl.u32 %v569, 7
    %v571 = vsub.s32 4, %v570
    %v572 = vrot.slane %v459, %v571
    %v573 = vmul.f32 %v567, %v572
    %v574 = vadd.f32 %v549, %v573
    %v575 = vlaneseq
    %v576 = vshrl.u32 %v575, 7
    %v577 = vsub.s32 4, %v576
    %v578 = vrot.slane %v460, %v577
    %v579 = vmul.f32 %v567, %v578
    %v580 = vadd.f32 %v555, %v579
    %v581 = vlaneseq
    %v582 = vshrl.u32 %v581, 7
    %v583 = vsub.s32 4, %v582
    %v584 = vrot.slane %v461, %v583
    %v585 = vmul.f32 %v567, %v584
    %v586 = vadd.f32 %v561, %v585
    %v587 = vadd.f32 %v458, %v574
    %v588 = vtanh.pop %v587
    %590 = vset.pattern.permute.xlu0 5
    %591 = vperm.xlu0 %590, %v588
    %v592 = vpop.permute.xlu0 %591
    %v594 = vlaneseq
    %v595 = vshrl.u32 %v594, 7
    %v596 = vsub.s32 5, %v595
    %v597 = vrot.slane %v459, %v596
    %v598 = vmul.f32 %v592, %v597
    %v599 = vadd.f32 %v574, %v598
    %v600 = vlaneseq
    %v601 = vshrl.u32 %v600, 7
    %v602 = vsub.s32 5, %v601
    %v603 = vrot.slane %v460, %v602
    %v604 = vmul.f32 %v592, %v603
    %v605 = vadd.f32 %v580, %v604
    %v606 = vlaneseq
    %v607 = vshrl.u32 %v606, 7
    %v608 = vsub.s32 5, %v607
    %v609 = vrot.slane %v461, %v608
    %v610 = vmul.f32 %v592, %v609
    %v611 = vadd.f32 %v586, %v610
    %v612 = vadd.f32 %v458, %v599
    %v613 = vtanh.pop %v612
    %615 = vset.pattern.permute.xlu0 6
    %616 = vperm.xlu0 %615, %v613
    %v617 = vpop.permute.xlu0 %616
    %v619 = vlaneseq
    %v620 = vshrl.u32 %v619, 7
    %v621 = vsub.s32 6, %v620
    %v622 = vrot.slane %v459, %v621
    %v623 = vmul.f32 %v617, %v622
    %v624 = vadd.f32 %v599, %v623
    %v625 = vlaneseq
    %v626 = vshrl.u32 %v625, 7
    %v627 = vsub.s32 6, %v626
    %v628 = vrot.slane %v460, %v627
    %v629 = vmul.f32 %v617, %v628
    %v630 = vadd.f32 %v605, %v629
    %v631 = vlaneseq
    %v632 = vshrl.u32 %v631, 7
    %v633 = vsub.s32 6, %v632
    %v634 = vrot.slane %v461, %v633
    %v635 = vmul.f32 %v617, %v634
    %v636 = vadd.f32 %v611, %v635
    %v637 = vadd.f32 %v458, %v624
    %v638 = vtanh.pop %v637
    %640 = vset.pattern.permute.xlu0 7
    %641 = vperm.xlu0 %640, %v638
    %v642 = vpop.permute.xlu0 %641
    %v644 = vlaneseq
    %v645 = vshrl.u32 %v644, 7
    %v646 = vsub.s32 7, %v645
    %v647 = vrot.slane %v460, %v646
    %v648 = vmul.f32 %v642, %v647
    %v649 = vadd.f32 %v630, %v648
    %v650 = vlaneseq
    %v651 = vshrl.u32 %v650, 7
    %v652 = vsub.s32 7, %v651
    %v653 = vrot.slane %v461, %v652
    %v654 = vmul.f32 %v642, %v653
    %v655 = vadd.f32 %v636, %v654
    %v656 = vld [vmem:[%s10] sm:$0xff]
    %657 = vmatprep.subr.mxu0 0.0
    %658 = vmatpush1.msra.mxu0 %v656
    %659 = vmatprep.subr.mxu0 0.0
    %660 = vmatpush1.msra.mxu0 0.0
    %661 = vmatprep.subr.mxu0 0.0
    %662 = vmatpush1.msra.mxu0 0.0
    %663 = vmatprep.subr.mxu0 0.0
    %664 = vmatpush1.msra.mxu0 0.0
    %665 = vmatprep.subr.mxu0 0.0
    %666 = vmatpush1.msra.mxu0 0.0
    %667 = vmatprep.subr.mxu0 0.0
    %668 = vmatpush1.msra.mxu0 0.0
    %669 = vmatprep.subr.mxu0 0.0
    %670 = vmatpush1.msra.mxu0 0.0
    %671 = vmatprep.subr.mxu0 0.0
    %672 = vmatpush1.msra.mxu0 0.0
    %673 = vmatprep.subr.mxu0 0.0
    %674 = vmatpush1.msra.mxu0 0.0
    %675 = vmatprep.subr.mxu0 0.0
    %676 = vmatpush1.msra.mxu0 0.0
    %677 = vmatprep.subr.mxu0 0.0
    %678 = vmatpush1.msra.mxu0 0.0
    %679 = vmatprep.subr.mxu0 0.0
    %680 = vmatpush1.msra.mxu0 0.0
    %681 = vmatprep.subr.mxu0 0.0
    %682 = vmatpush1.msra.mxu0 0.0
    %683 = vmatprep.subr.mxu0 0.0
    %684 = vmatpush1.msra.mxu0 0.0
    %685 = vmatprep.subr.mxu0 0.0
    %686 = vmatpush1.msra.mxu0 0.0
    %687 = vmatprep.subr.mxu0 0.0
    %688 = vmatpush1.msra.mxu0 0.0
    %689 = vmatprep.subr.mxu0 0.0
    %690 = vmatpush1.msra.mxu0 0.0
    %691 = vmatprep.subr.mxu0 0.0
    %692 = vmatpush1.msra.mxu0 0.0
    %693 = vmatprep.subr.mxu0 0.0
    %694 = vmatpush1.msra.mxu0 0.0
    %695 = vmatprep.subr.mxu0 0.0
    %696 = vmatpush1.msra.mxu0 0.0
    %697 = vmatprep.subr.mxu0 0.0
    %698 = vmatpush1.msra.mxu0 0.0
    %699 = vmatprep.subr.mxu0 0.0
    %700 = vmatpush1.msra.mxu0 0.0
    %701 = vmatprep.subr.mxu0 0.0
    %702 = vmatpush1.msra.mxu0 0.0
    %703 = vmatprep.subr.mxu0 0.0
    %704 = vmatpush1.msra.mxu0 0.0
    %705 = vmatprep.subr.mxu0 0.0
    %706 = vmatpush1.msra.mxu0 0.0
    %707 = vmatprep.subr.mxu0 0.0
    %708 = vmatpush1.msra.mxu0 0.0
    %709 = vmatprep.subr.mxu0 0.0
    %710 = vmatpush1.msra.mxu0 0.0
    %711 = vmatprep.subr.mxu0 0.0
    %712 = vmatpush1.msra.mxu0 0.0
    %713 = vmatprep.subr.mxu0 0.0
    %714 = vmatpush1.msra.mxu0 0.0
    %715 = vmatprep.subr.mxu0 0.0
    %716 = vmatpush1.msra.mxu0 0.0
    %717 = vmatprep.subr.mxu0 0.0
    %718 = vmatpush1.msra.mxu0 0.0
    %719 = vmatprep.subr.mxu0 0.0
    %720 = vmatpush1.msra.mxu0 0.0
    %721 = vmatprep.mubr.f32.mxu0 0.0
    %722 = vmatmul.mubr.f32.gmra.mrb[0].mxu0 %v298
    %v723 = vpop.f32.mrb[0].mxu0
    %v724 = vadd.f32 0.0, %v723
    %v725 = vpop.f32.mrb[0].mxu0
    %726 = vdwg.mxu0
    %v727 = vlaneseq
    %v728 = vshrl.u32 %v727, 7
    %v729 = vsub.s32 0, %v728
    %v730 = vrot.slane %v724, %v729
    %v731 = vadd.f32 %v730, %v649
    %v732 = vld [vmem:[%s12] sm:$0xf]
    %v734 = vsel %vm215, %v732, 0
    %736 = vmatprep.subr.mxu0 0.0
    %737 = vmatpush1.msra.mxu0 %v734
    %738 = vmatprep.subr.mxu0 0.0
    %739 = vmatpush1.msra.mxu0 0.0
    %740 = vmatprep.subr.mxu0 0.0
    %741 = vmatpush1.msra.mxu0 0.0
    %742 = vmatprep.subr.mxu0 0.0
    %743 = vmatpush1.msra.mxu0 0.0
    %744 = vmatprep.subr.mxu0 0.0
    %745 = vmatpush1.msra.mxu0 0.0
    %746 = vmatprep.subr.mxu0 0.0
    %747 = vmatpush1.msra.mxu0 0.0
    %748 = vmatprep.subr.mxu0 0.0
    %749 = vmatpush1.msra.mxu0 0.0
    %750 = vmatprep.subr.mxu0 0.0
    %751 = vmatpush1.msra.mxu0 0.0
    %752 = vmatprep.subr.mxu0 0.0
    %753 = vmatpush1.msra.mxu0 0.0
    %754 = vmatprep.subr.mxu0 0.0
    %755 = vmatpush1.msra.mxu0 0.0
    %756 = vmatprep.subr.mxu0 0.0
    %757 = vmatpush1.msra.mxu0 0.0
    %758 = vmatprep.subr.mxu0 0.0
    %759 = vmatpush1.msra.mxu0 0.0
    %760 = vmatprep.subr.mxu0 0.0
    %761 = vmatpush1.msra.mxu0 0.0
    %762 = vmatprep.subr.mxu0 0.0
    %763 = vmatpush1.msra.mxu0 0.0
    %764 = vmatprep.subr.mxu0 0.0
    %765 = vmatpush1.msra.mxu0 0.0
    %766 = vmatprep.subr.mxu0 0.0
    %767 = vmatpush1.msra.mxu0 0.0
    %768 = vmatprep.subr.mxu0 0.0
    %769 = vmatpush1.msra.mxu0 0.0
    %770 = vmatprep.subr.mxu0 0.0
    %771 = vmatpush1.msra.mxu0 0.0
    %772 = vmatprep.subr.mxu0 0.0
    %773 = vmatpush1.msra.mxu0 0.0
    %774 = vmatprep.subr.mxu0 0.0
    %775 = vmatpush1.msra.mxu0 0.0
    %776 = vmatprep.subr.mxu0 0.0
    %777 = vmatpush1.msra.mxu0 0.0
    %778 = vmatprep.subr.mxu0 0.0
    %779 = vmatpush1.msra.mxu0 0.0
    %780 = vmatprep.subr.mxu0 0.0
    %781 = vmatpush1.msra.mxu0 0.0
    %782 = vmatprep.subr.mxu0 0.0
    %783 = vmatpush1.msra.mxu0 0.0
    %784 = vmatprep.subr.mxu0 0.0
    %785 = vmatpush1.msra.mxu0 0.0
    %786 = vmatprep.subr.mxu0 0.0
    %787 = vmatpush1.msra.mxu0 0.0
    %788 = vmatprep.subr.mxu0 0.0
    %789 = vmatpush1.msra.mxu0 0.0
    %790 = vmatprep.subr.mxu0 0.0
    %791 = vmatpush1.msra.mxu0 0.0
    %792 = vmatprep.subr.mxu0 0.0
    %793 = vmatpush1.msra.mxu0 0.0
    %794 = vmatprep.subr.mxu0 0.0
    %795 = vmatpush1.msra.mxu0 0.0
    %796 = vmatprep.subr.mxu0 0.0
    %797 = vmatpush1.msra.mxu0 0.0
    %798 = vmatprep.subr.mxu0 0.0
    %799 = vmatpush1.msra.mxu0 0.0
    %800 = vmatprep.mubr.f32.mxu0 0.0
    %801 = vmatmul.mubr.f32.gmra.mrb[0].mxu0 %v372
    %v802 = vpop.f32.mrb[0].mxu0
    %v803 = vadd.f32 0.0, %v802
    %v804 = vpop.f32.mrb[0].mxu0
    %805 = vdwg.mxu0
    %v806 = vadd.f32 %v731, %v803
    %v807 = vld [vmem:[%s13] sm:$0xff]
    %v809 = vsel %vm296, %v806, 0
    %811 = vmatprep.subr.mxu0 0.0
    %812 = vmatpush1.msra.mxu0 %v807
    %813 = vmatprep.subr.mxu0 0.0
    %814 = vmatpush1.msra.mxu0 0.0
    %815 = vmatprep.subr.mxu0 0.0
    %816 = vmatpush1.msra.mxu0 0.0
    %817 = vmatprep.subr.mxu0 0.0
    %818 = vmatpush1.msra.mxu0 0.0
    %819 = vmatprep.subr.mxu0 0.0
    %820 = vmatpush1.msra.mxu0 0.0
    %821 = vmatprep.subr.mxu0 0.0
    %822 = vmatpush1.msra.mxu0 0.0
    %823 = vmatprep.subr.mxu0 0.0
    %824 = vmatpush1.msra.mxu0 0.0
    %825 = vmatprep.subr.mxu0 0.0
    %826 = vmatpush1.msra.mxu0 0.0
    %827 = vmatprep.subr.mxu0 0.0
    %828 = vmatpush1.msra.mxu0 0.0
    %829 = vmatprep.subr.mxu0 0.0
    %830 = vmatpush1.msra.mxu0 0.0
    %831 = vmatprep.subr.mxu0 0.0
    %832 = vmatpush1.msra.mxu0 0.0
    %833 = vmatprep.subr.mxu0 0.0
    %834 = vmatpush1.msra.mxu0 0.0
    %835 = vmatprep.subr.mxu0 0.0
    %836 = vmatpush1.msra.mxu0 0.0
    %837 = vmatprep.subr.mxu0 0.0
    %838 = vmatpush1.msra.mxu0 0.0
    %839 = vmatprep.subr.mxu0 0.0
    %840 = vmatpush1.msra.mxu0 0.0
    %841 = vmatprep.subr.mxu0 0.0
    %842 = vmatpush1.msra.mxu0 0.0
    %843 = vmatprep.subr.mxu0 0.0
    %844 = vmatpush1.msra.mxu0 0.0
    %845 = vmatprep.subr.mxu0 0.0
    %846 = vmatpush1.msra.mxu0 0.0
    %847 = vmatprep.subr.mxu0 0.0
    %848 = vmatpush1.msra.mxu0 0.0
    %849 = vmatprep.subr.mxu0 0.0
    %850 = vmatpush1.msra.mxu0 0.0
    %851 = vmatprep.subr.mxu0 0.0
    %852 = vmatpush1.msra.mxu0 0.0
    %853 = vmatprep.subr.mxu0 0.0
    %854 = vmatpush1.msra.mxu0 0.0
    %855 = vmatprep.subr.mxu0 0.0
    %856 = vmatpush1.msra.mxu0 0.0
    %857 = vmatprep.subr.mxu0 0.0
    %858 = vmatpush1.msra.mxu0 0.0
    %859 = vmatprep.subr.mxu0 0.0
    %860 = vmatpush1.msra.mxu0 0.0
    %861 = vmatprep.subr.mxu0 0.0
    %862 = vmatpush1.msra.mxu0 0.0
    %863 = vmatprep.subr.mxu0 0.0
    %864 = vmatpush1.msra.mxu0 0.0
    %865 = vmatprep.subr.mxu0 0.0
    %866 = vmatpush1.msra.mxu0 0.0
    %867 = vmatprep.subr.mxu0 0.0
    %868 = vmatpush1.msra.mxu0 0.0
    %869 = vmatprep.subr.mxu0 0.0
    %870 = vmatpush1.msra.mxu0 0.0
    %871 = vmatprep.subr.mxu0 0.0
    %872 = vmatpush1.msra.mxu0 0.0
    %873 = vmatprep.subr.mxu0 0.0
    %874 = vmatpush1.msra.mxu0 0.0
    %875 = vmatprep.mubr.f32.mxu0 0.0
    %876 = vmatmul.mubr.f32.gmra.mrb[0].mxu0 %v809
    %v877 = vpop.f32.mrb[0].mxu0
    %v878 = vadd.f32 0.0, %v877
    %v879 = vpop.f32.mrb[0].mxu0
    %880 = vdwg.mxu0
    %v881 = vld [vmem:[%s14] sm:$0xff]
    %v883 = vsel %vm296, %v878, 0
    %885 = vmatprep.subr.mxu0 0.0
    %886 = vmatpush1.msra.mxu0 %v881
    %887 = vmatprep.subr.mxu0 0.0
    %888 = vmatpush1.msra.mxu0 0.0
    %889 = vmatprep.subr.mxu0 0.0
    %890 = vmatpush1.msra.mxu0 0.0
    %891 = vmatprep.subr.mxu0 0.0
    %892 = vmatpush1.msra.mxu0 0.0
    %893 = vmatprep.subr.mxu0 0.0
    %894 = vmatpush1.msra.mxu0 0.0
    %895 = vmatprep.subr.mxu0 0.0
    %896 = vmatpush1.msra.mxu0 0.0
    %897 = vmatprep.subr.mxu0 0.0
    %898 = vmatpush1.msra.mxu0 0.0
    %899 = vmatprep.subr.mxu0 0.0
    %900 = vmatpush1.msra.mxu0 0.0
    %901 = vmatprep.subr.mxu0 0.0
    %902 = vmatpush1.msra.mxu0 0.0
    %903 = vmatprep.subr.mxu0 0.0
    %904 = vmatpush1.msra.mxu0 0.0
    %905 = vmatprep.subr.mxu0 0.0
    %906 = vmatpush1.msra.mxu0 0.0
    %907 = vmatprep.subr.mxu0 0.0
    %908 = vmatpush1.msra.mxu0 0.0
    %909 = vmatprep.subr.mxu0 0.0
    %910 = vmatpush1.msra.mxu0 0.0
    %911 = vmatprep.subr.mxu0 0.0
    %912 = vmatpush1.msra.mxu0 0.0
    %913 = vmatprep.subr.mxu0 0.0
    %914 = vmatpush1.msra.mxu0 0.0
    %915 = vmatprep.subr.mxu0 0.0
    %916 = vmatpush1.msra.mxu0 0.0
    %917 = vmatprep.subr.mxu0 0.0
    %918 = vmatpush1.msra.mxu0 0.0
    %919 = vmatprep.subr.mxu0 0.0
    %920 = vmatpush1.msra.mxu0 0.0
    %921 = vmatprep.subr.mxu0 0.0
    %922 = vmatpush1.msra.mxu0 0.0
    %923 = vmatprep.subr.mxu0 0.0
    %924 = vmatpush1.msra.mxu0 0.0
    %925 = vmatprep.subr.mxu0 0.0
    %926 = vmatpush1.msra.mxu0 0.0
    %927 = vmatprep.subr.mxu0 0.0
    %928 = vmatpush1.msra.mxu0 0.0
    %929 = vmatprep.subr.mxu0 0.0
    %930 = vmatpush1.msra.mxu0 0.0
    %931 = vmatprep.subr.mxu0 0.0
    %932 = vmatpush1.msra.mxu0 0.0
    %933 = vmatprep.subr.mxu0 0.0
    %934 = vmatpush1.msra.mxu0 0.0
    %935 = vmatprep.subr.mxu0 0.0
    %936 = vmatpush1.msra.mxu0 0.0
    %937 = vmatprep.subr.mxu0 0.0
    %938 = vmatpush1.msra.mxu0 0.0
    %939 = vmatprep.subr.mxu0 0.0
    %940 = vmatpush1.msra.mxu0 0.0
    %941 = vmatprep.subr.mxu0 0.0
    %942 = vmatpush1.msra.mxu0 0.0
    %943 = vmatprep.subr.mxu0 0.0
    %944 = vmatpush1.msra.mxu0 0.0
    %945 = vmatprep.subr.mxu0 0.0
    %946 = vmatpush1.msra.mxu0 0.0
    %947 = vmatprep.subr.mxu0 0.0
    %948 = vmatpush1.msra.mxu0 0.0
    %949 = vmatprep.mubr.f32.mxu0 0.0
    %950 = vmatmul.mubr.f32.gmra.mrb[0].mxu0 %v883
    %v951 = vpop.f32.mrb[0].mxu0
    %v952 = vadd.f32 %v655, %v951
    %v953 = vpop.f32.mrb[0].mxu0
    %954 = vdwg.mxu0
    %v955 = vld [vmem:[%s16] sm:$0xf]
    %v957 = vsel %vm215, %v955, 0
    %959 = vmatprep.subr.mxu0 0.0
    %960 = vmatpush1.msra.mxu0 %v957
    %961 = vmatprep.subr.mxu0 0.0
    %962 = vmatpush1.msra.mxu0 0.0
    %963 = vmatprep.subr.mxu0 0.0
    %964 = vmatpush1.msra.mxu0 0.0
    %965 = vmatprep.subr.mxu0 0.0
    %966 = vmatpush1.msra.mxu0 0.0
    %967 = vmatprep.subr.mxu0 0.0
    %968 = vmatpush1.msra.mxu0 0.0
    %969 = vmatprep.subr.mxu0 0.0
    %970 = vmatpush1.msra.mxu0 0.0
    %971 = vmatprep.subr.mxu0 0.0
    %972 = vmatpush1.msra.mxu0 0.0
    %973 = vmatprep.subr.mxu0 0.0
    %974 = vmatpush1.msra.mxu0 0.0
    %975 = vmatprep.subr.mxu0 0.0
    %976 = vmatpush1.msra.mxu0 0.0
    %977 = vmatprep.subr.mxu0 0.0
    %978 = vmatpush1.msra.mxu0 0.0
    %979 = vmatprep.subr.mxu0 0.0
    %980 = vmatpush1.msra.mxu0 0.0
    %981 = vmatprep.subr.mxu0 0.0
    %982 = vmatpush1.msra.mxu0 0.0
    %983 = vmatprep.subr.mxu0 0.0
    %984 = vmatpush1.msra.mxu0 0.0
    %985 = vmatprep.subr.mxu0 0.0
    %986 = vmatpush1.msra.mxu0 0.0
    %987 = vmatprep.subr.mxu0 0.0
    %988 = vmatpush1.msra.mxu0 0.0
    %989 = vmatprep.subr.mxu0 0.0
    %990 = vmatpush1.msra.mxu0 0.0
    %991 = vmatprep.subr.mxu0 0.0
    %992 = vmatpush1.msra.mxu0 0.0
    %993 = vmatprep.subr.mxu0 0.0
    %994 = vmatpush1.msra.mxu0 0.0
    %995 = vmatprep.subr.mxu0 0.0
    %996 = vmatpush1.msra.mxu0 0.0
    %997 = vmatprep.subr.mxu0 0.0
    %998 = vmatpush1.msra.mxu0 0.0
    %999 = vmatprep.subr.mxu0 0.0
    %1000 = vmatpush1.msra.mxu0 0.0
    %1001 = vmatprep.subr.mxu0 0.0
    %1002 = vmatpush1.msra.mxu0 0.0
    %1003 = vmatprep.subr.mxu0 0.0
    %1004 = vmatpush1.msra.mxu0 0.0
    %1005 = vmatprep.subr.mxu0 0.0
    %1006 = vmatpush1.msra.mxu0 0.0
    %1007 = vmatprep.subr.mxu0 0.0
    %1008 = vmatpush1.msra.mxu0 0.0
    %1009 = vmatprep.subr.mxu0 0.0
    %1010 = vmatpush1.msra.mxu0 0.0
    %1011 = vmatprep.subr.mxu0 0.0
    %1012 = vmatpush1.msra.mxu0 0.0
    %1013 = vmatprep.subr.mxu0 0.0
    %1014 = vmatpush1.msra.mxu0 0.0
    %1015 = vmatprep.subr.mxu0 0.0
    %1016 = vmatpush1.msra.mxu0 0.0
    %1017 = vmatprep.subr.mxu0 0.0
    %1018 = vmatpush1.msra.mxu0 0.0
    %1019 = vmatprep.subr.mxu0 0.0
    %1020 = vmatpush1.msra.mxu0 0.0
    %1021 = vmatprep.subr.mxu0 0.0
    %1022 = vmatpush1.msra.mxu0 0.0
    %1023 = vmatprep.mubr.f32.mxu0 0.0
    %1024 = vmatmul.mubr.f32.gmra.mrb[0].mxu0 %v372
    %v1025 = vpop.f32.mrb[0].mxu0
    %v1026 = vadd.f32 0.0, %v1025
    %v1027 = vpop.f32.mrb[0].mxu0
    %1028 = vdwg.mxu0
    %v1029 = vadd.f32 %v952, %v1026
    %v1030 = vmul.f32 %v1029, 20.0
    %vm1031 = vcmask 9216
    %1032 = vst.msk [vmem:[#allocation13] sm:$0x3] %vm1031, %v1030
    %1033 = vrot.lane.b32.xlu0 %v878, 2
    %v1034 = vpop.permute.xlu0 %1033
    %vm1036 = vcmask 74768
    %1037 = vst.msk [vmem:[#allocation13] sm:$0x3] %vm1036, %v1034
    // Predicated region
    $region94: #{tpu_custom_call.1} parent=1 // pred_check
      _
    $region95: #{tpu_custom_call.1} parent=1 // pred_check_branch
      %1039 = sbr.rel (0) target = $region97
    $region96: #{tpu_custom_call.1} parent=1 // pred_region
      %s1041 = ssub.s32 32, 32
      %1042 = vsyncadd [#allocation4], %s1041
      %s1044 = sshll.u32 [#allocation13], 4
      %s1045 = int_to_ptr.vmem [resolvable:$true] %s1044
      %1047 = dma.vmem_to_hbm [thread:$0]  %s1045, 32, %s17, [#allocation4]
    $region97: #{tpu_custom_call.1} parent=1 // pred_fallthru
      _
    // Predicated region
    $region98: #{tpu_custom_call.1} parent=1 // pred_check
      _
    $region99: #{tpu_custom_call.1} parent=1 // pred_check_branch
      %1049 = sbr.rel (0) target = $region101
    $region100: #{tpu_custom_call.1} parent=1 // pred_region
      %1050 = dma.done [#allocation4], 32
    $region101: #{tpu_custom_call.1} parent=1 // pred_fallthru
      _
    %1051 = vsyncpa [#allocation3], 1
    %1052 = vsyncpa [#allocation6], 1
    %1053 = vsyncpa [#allocation9], 1
    %1054 = vsyncpa [#allocation12], 1
    %1055 = vsyncpa [#allocation4], 1

</llo_original>
